<compile_context>
chip_gen: v7x
topology: tpu7x:2x2x1
jax: 0.10.0
libtpu: 0.0.40
codegen_flags: <defaults>
</compile_context>

<pallas_src>
import functools

import jax
import jax.numpy as jnp
from jax.experimental import pallas as pl
from jax.experimental.pallas import tpu as pltpu


def encoder_layer_kernel(x_ref,
                         wqkv_ref, bqkv_ref, wo_ref, bo_ref,
                         g1_ref, be1_ref,
                         w1_ref, b1_ref, w2_ref, b2_ref,
                         g2_ref, be2_ref,
                         out_ref, attw_ref,
                         h_scratch,
                         *, num_heads):
    layer = pl.program_id(1)
    num_layers = pl.num_programs(1)
    bt, S, D = x_ref.shape
    H = num_heads
    hd = D // H
    R = bt * S
    eps = 1e-5

    # First layer of every batch tile: load activations into the VMEM carry.
    @pl.when(layer == 0)
    def _():
        h_scratch[...] = x_ref[...].reshape(R, D).astype(jnp.float32)

    h = h_scratch[...]                                                  # (R, D) f32

    # ---- fused QKV projection (1/sqrt(hd) already folded into wq/bq by the wrapper) --
    qkv = jnp.dot(h, wqkv_ref[0], preferred_element_type=jnp.float32) + bqkv_ref[0]
    qkv3 = qkv.reshape(bt, S, 3 * D)                                    # (bt, S, 3D)

    # ---- multi-head attention, batched over the batch tile ---------------------------
    ctx_heads = []
    for hh in range(H):                                                 # static, H small
        q_h = qkv3[:, :, hh * hd:(hh + 1) * hd]                         # (bt, S, hd)
        k_h = qkv3[:, :, D + hh * hd:D + (hh + 1) * hd]
        v_h = qkv3[:, :, 2 * D + hh * hd:2 * D + (hh + 1) * hd]

        s_h = jnp.einsum('bqd,bkd->bqk', q_h, k_h,
                         preferred_element_type=jnp.float32)            # (bt, S, S)
        m_h = jnp.max(s_h, axis=-1, keepdims=True)
        e_h = jnp.exp(s_h - m_h)
        a_h = e_h / jnp.sum(e_h, axis=-1, keepdims=True)                # exact softmax

        # one consolidated per-head store for this (batch tile, layer)
        attw_ref[:, 0, hh, :, :] = a_h.astype(attw_ref.dtype)

        ctx_heads.append(jnp.einsum('bqk,bkd->bqd', a_h, v_h,
                                    preferred_element_type=jnp.float32))  # (bt, S, hd)

    ctx = (ctx_heads[0] if H == 1
           else jnp.concatenate(ctx_heads, axis=-1)).reshape(R, D)        # (R, D)
    attn = jnp.dot(ctx, wo_ref[0], preferred_element_type=jnp.float32) + bo_ref[0]

    # ---- residual + LayerNorm 1 (f32) -------------------------------------------------
    res1 = attn + h
    mu1 = jnp.mean(res1, axis=-1, keepdims=True)
    var1 = jnp.mean((res1 - mu1) ** 2, axis=-1, keepdims=True)
    n1 = (res1 - mu1) * jax.lax.rsqrt(var1 + eps) * g1_ref[0] + be1_ref[0]

    # ---- feed-forward: Linear -> ReLU -> Linear ---------------------------------------
    hidden = jnp.maximum(
        jnp.dot(n1, w1_ref[0], preferred_element_type=jnp.float32) + b1_ref[0], 0.0)
    ff = jnp.dot(hidden, w2_ref[0], preferred_element_type=jnp.float32) + b2_ref[0]

    # ---- residual + LayerNorm 2 (f32) -------------------------------------------------
    res2 = ff + n1
    mu2 = jnp.mean(res2, axis=-1, keepdims=True)
    var2 = jnp.mean((res2 - mu2) ** 2, axis=-1, keepdims=True)
    h_new = (res2 - mu2) * jax.lax.rsqrt(var2 + eps) * g2_ref[0] + be2_ref[0]

    h_scratch[...] = h_new                                              # carry to next layer

    @pl.when(layer == num_layers - 1)
    def _():
        out_ref[...] = h_new.reshape(bt, S, D).astype(out_ref.dtype)


def _num_tensorcores():
    """1 TensorCore on v5e/v6e; 2 on v7x-class chips."""
    try:
        kind = str(getattr(jax.devices()[0], "device_kind", "")).lower()
        if "v7" in kind or "7x" in kind:
            return 2
    except Exception:
        pass
    return 1


def _pick_batch_tile(B, S, num_cores):
    """Batch elements per grid step.  Single grid step on 1-TC chips (avoid per-step
    pipeline overhead); split into >= num_cores parallel steps only on multi-core chips."""
    candidates = [c for c in range(1, B + 1) if B % c == 0 and c * S <= 256]
    if not candidates:
        return 1
    if num_cores > 1:
        multi = [c for c in candidates if (B // c) >= num_cores]
        if multi:
            return max(multi)
    return max(candidates)


def encoder_forward(params, token_ids, num_heads):
    """token_ids: (B, S) int32. Returns (out (B,S,D) f32, list of (B,H,S,S) f32)."""
    word = params["word_emb"]
    pos = params["pos_emb"]
    B, S = token_ids.shape
    D = word.shape[1]
    layers = params["layers"]
    L = len(layers)
    H = num_heads
    assert D % H == 0, "d_model must be divisible by num_heads"
    hd = D // H
    scale = 1.0 / float(hd) ** 0.5

    # TODO(synk): embedding gathers are data-dependent lookups; kept as plain-JAX glue.
    x = (word[token_ids] + pos[None, :S, :]).astype(jnp.float32)         # (B, S, D)

    f32 = jnp.float32

    def stack(name):
        return jnp.stack([lp[name] for lp in layers], axis=0).astype(f32)

    # Fused QKV weight/bias with the softmax scale folded into the Q projection.
    wqkv = jnp.concatenate([stack("wq") * scale, stack("wk"), stack("wv")], axis=-1)
    bqkv = jnp.concatenate([stack("bq") * scale, stack("bk"), stack("bv")], axis=-1)

    weights = [
        wqkv, bqkv,                       # (L, D, 3D), (L, 1, 3D)
        stack("wo"), stack("bo"),         # (L, D, D),  (L, 1, D)
        stack("g1"), stack("be1"),        # (L, 1, D)
        stack("w1"), stack("b1"),         # (L, D, d_ff), (L, 1, d_ff)
        stack("w2"), stack("b2"),         # (L, d_ff, D), (L, 1, D)
        stack("g2"), stack("be2"),        # (L, 1, D)
    ]

    bt = _pick_batch_tile(B, S, _num_tensorcores())
    grid = (B // bt, L)                   # layer axis last (carried in VMEM scratch)

    def layer_spec(arr):
        nz = arr.ndim - 1
        return pl.BlockSpec((1,) + tuple(arr.shape[1:]),
                            lambda b, l, _nz=nz: (l,) + (0,) * _nz)

    in_specs = [pl.BlockSpec((bt, S, D), lambda b, l: (b, 0, 0))]
    in_specs += [layer_spec(w) for w in weights]

    out_specs = [
        pl.BlockSpec((bt, S, D), lambda b, l: (b, 0, 0)),                # resident over l
        pl.BlockSpec((bt, 1, H, S, S), lambda b, l: (b, l, 0, 0, 0)),    # one block / layer
    ]
    out_shape = (jax.ShapeDtypeStruct((B, S, D), jnp.float32),
                 jax.ShapeDtypeStruct((B, L, H, S, S), jnp.float32))

    fn = pl.pallas_call(
        functools.partial(encoder_layer_kernel, num_heads=H),
        out_shape=out_shape,
        grid_spec=pltpu.PrefetchScalarGridSpec(
            num_scalar_prefetch=0,
            grid=grid,
            in_specs=in_specs,
            out_specs=out_specs,
            scratch_shapes=[pltpu.VMEM((bt * S, D), jnp.float32)],       # activation carry
        ),
        compiler_params=pltpu.CompilerParams(
            dimension_semantics=("parallel", "arbitrary"),
            vmem_limit_bytes=32 * 1024 * 1024,
        ),
    )
    out, attw = fn(x, *weights)
    att_maps = [attw[:, l] for l in range(L)]
    return out, att_maps


# ------------------------------- pure-JAX reference ---------------------------------
def _layernorm_ref(x, g, b, eps=1e-5):
    mu = jnp.mean(x, axis=-1, keepdims=True)
    var = jnp.mean((x - mu) ** 2, axis=-1, keepdims=True)
    return (x - mu) * jax.lax.rsqrt(var + eps) * g + b


def encoder_reference(params, token_ids, num_heads):
    word, pos = params["word_emb"], params["pos_emb"]
    B, S = token_ids.shape
    D = word.shape[1]
    H = num_heads
    hd = D // H
    hp = jax.lax.Precision.HIGHEST
    out = (word[token_ids] + pos[None, :S, :]).astype(jnp.float32)
    att_maps = []
    for lp in params["layers"]:
        q = jnp.einsum('bsd,de->bse', out, lp["wq"], precision=hp) + lp["bq"]
        k = jnp.einsum('bsd,de->bse', out, lp["wk"], precision=hp) + lp["bk"]
        v = jnp.einsum('bsd,de->bse', out, lp["wv"], precision=hp) + lp["bv"]
        qh, kh, vh = (t.reshape(B, S, H, hd) for t in (q, k, v))
        scores = jnp.einsum('bqhd,bkhd->bhqk', qh, kh, precision=hp) / (hd ** 0.5)
        attw = jax.nn.softmax(scores, axis=-1)
        ctx = jnp.einsum('bhqk,bkhd->bqhd', attw, vh, precision=hp).reshape(B, S, D)
        attn = jnp.einsum('bsd,de->bse', ctx, lp["wo"], precision=hp) + lp["bo"]
        n1 = _layernorm_ref(attn + out, lp["g1"], lp["be1"])
        hid = jnp.maximum(jnp.einsum('bsd,df->bsf', n1, lp["w1"], precision=hp) + lp["b1"], 0.0)
        ff = jnp.einsum('bsf,fd->bsd', hid, lp["w2"], precision=hp) + lp["b2"]
        out = _layernorm_ref(ff + n1, lp["g2"], lp["be2"])
        att_maps.append(attw)
    return out, att_maps


def init_encoder_params(key, vocab_size, seq_len, d_model, d_ff, num_layers):
    keys = jax.random.split(key, 2 + num_layers)
    params = {
        "word_emb": 0.02 * jax.random.normal(keys[0], (vocab_size, d_model), jnp.float32),
        "pos_emb": 0.02 * jax.random.normal(keys[1], (seq_len, d_model), jnp.float32),
        "layers": [],
    }
    for li in range(num_layers):
        lk = jax.random.split(keys[2 + li], 8)
        s = 0.05
        params["layers"].append({
            "wq": s * jax.random.normal(lk[0], (d_model, d_model), jnp.float32),
            "bq": jnp.zeros((1, d_model), jnp.float32),
            "wk": s * jax.random.normal(lk[1], (d_model, d_model), jnp.float32),
            "bk": jnp.zeros((1, d_model), jnp.float32),
            "wv": s * jax.random.normal(lk[2], (d_model, d_model), jnp.float32),
            "bv": jnp.zeros((1, d_model), jnp.float32),
            "wo": s * jax.random.normal(lk[3], (d_model, d_model), jnp.float32),
            "bo": jnp.zeros((1, d_model), jnp.float32),
            "g1": jnp.ones((1, d_model), jnp.float32),
            "be1": jnp.zeros((1, d_model), jnp.float32),
            "w1": s * jax.random.normal(lk[4], (d_model, d_ff), jnp.float32),
            "b1": jnp.zeros((1, d_ff), jnp.float32),
            "w2": s * jax.random.normal(lk[5], (d_ff, d_model), jnp.float32),
            "b2": jnp.zeros((1, d_model), jnp.float32),
            "g2": jnp.ones((1, d_model), jnp.float32),
            "be2": jnp.zeros((1, d_model), jnp.float32),
        })
    return params


if __name__ == "__main__":
    # Small shapes consistent with the module.
    B, S = 2, 8
    vocab_size = 50
    d_model, d_ff = 32, 64
    num_layers, num_heads = 4, 2

    key = jax.random.PRNGKey(0)
    pkey, xkey = jax.random.split(key)
    params = init_encoder_params(pkey, vocab_size, S, d_model, d_ff, num_layers)
    token_ids = jax.random.randint(xkey, (B, S), 0, vocab_size, dtype=jnp.int32)

    out, att_maps = encoder_forward(params, token_ids, num_heads)
    out = jax.block_until_ready(out)
    att_maps = [jax.block_until_ready(a) for a in att_maps]

    assert out.shape == (B, S, d_model)
    assert len(att_maps) == num_layers
    assert all(a.shape == (B, num_heads, S, S) for a in att_maps)
    assert bool(jnp.all(jnp.isfinite(out)))
    # exact softmax divide -> attention rows sum to 1 tightly
    assert bool(jnp.allclose(jnp.sum(att_maps[0], axis=-1), 1.0, atol=1e-4))

    # compare against a pure-JAX f32 reference (loose tolerance for MXU rounding)
    ref_out, ref_maps = encoder_reference(params, token_ids, num_heads)
    assert bool(jnp.allclose(out, ref_out, atol=3e-2, rtol=3e-2))
    assert all(bool(jnp.allclose(a, r, atol=3e-2, rtol=3e-2))
               for a, r in zip(att_maps, ref_maps))

    print("KERNEL_OK")
</pallas_src>

<mosaic_0001>
module attributes {stable_mosaic.version = 11 : i64} {
  func.func @encoder_layer_kernel(%arg0: i32, %arg1: i32, %arg2: memref<2x8x32xf32, #tpu.memory_space<vmem>>, %arg3: memref<1x32x96xf32, #tpu.memory_space<vmem>>, %arg4: memref<1x1x96xf32, #tpu.memory_space<vmem>>, %arg5: memref<1x32x32xf32, #tpu.memory_space<vmem>>, %arg6: memref<1x1x32xf32, #tpu.memory_space<vmem>>, %arg7: memref<1x1x32xf32, #tpu.memory_space<vmem>>, %arg8: memref<1x1x32xf32, #tpu.memory_space<vmem>>, %arg9: memref<1x32x64xf32, #tpu.memory_space<vmem>>, %arg10: memref<1x1x64xf32, #tpu.memory_space<vmem>>, %arg11: memref<1x64x32xf32, #tpu.memory_space<vmem>>, %arg12: memref<1x1x32xf32, #tpu.memory_space<vmem>>, %arg13: memref<1x1x32xf32, #tpu.memory_space<vmem>>, %arg14: memref<1x1x32xf32, #tpu.memory_space<vmem>>, %arg15: memref<2x8x32xf32, #tpu.memory_space<vmem>>, %arg16: memref<2x1x2x8x8xf32, #tpu.memory_space<vmem>>, %arg17: memref<16x32xf32, #tpu.memory_space<vmem>>) attributes {dimension_semantics = [#tpu.dimension_semantics<parallel>, #tpu.dimension_semantics<arbitrary>], iteration_bounds = array<i64: 1, 4>, scalar_prefetch = 0 : i64, scratch_operands = 1 : i64, tpu.core_type = #tpu.core_type<tc>, window_params = [{transform_indices = @transform_0, window_bounds = array<i64: 2, 8, 32>}, {transform_indices = @transform_1, window_bounds = array<i64: 1, 32, 96>}, {transform_indices = @transform_2, window_bounds = array<i64: 1, 1, 96>}, {transform_indices = @transform_3, window_bounds = array<i64: 1, 32, 32>}, {transform_indices = @transform_4, window_bounds = array<i64: 1, 1, 32>}, {transform_indices = @transform_5, window_bounds = array<i64: 1, 1, 32>}, {transform_indices = @transform_6, window_bounds = array<i64: 1, 1, 32>}, {transform_indices = @transform_7, window_bounds = array<i64: 1, 32, 64>}, {transform_indices = @transform_8, window_bounds = array<i64: 1, 1, 64>}, {transform_indices = @transform_9, window_bounds = array<i64: 1, 64, 32>}, {transform_indices = @transform_10, window_bounds = array<i64: 1, 1, 32>}, {transform_indices = @transform_11, window_bounds = array<i64: 1, 1, 32>}, {transform_indices = @transform_12, window_bounds = array<i64: 1, 1, 32>}, {transform_indices = @transform_13, window_bounds = array<i64: 2, 8, 32>}, {transform_indices = @transform_14, window_bounds = array<i64: 2, 1, 2, 8, 8>}]} {
    %c0_i32 = arith.constant 0 : i32
    %0 = arith.cmpi eq, %arg1, %c0_i32 : i32
    %1 = arith.extui %0 : i1 to i32
    %c0_i32_0 = arith.constant 0 : i32
    %2 = arith.cmpi ne, %1, %c0_i32_0 : i32
    scf.if %2 {
      %c0_72 = arith.constant 0 : index
      %c0_73 = arith.constant 0 : index
      %c0_74 = arith.constant 0 : index
      %129 = vector.load %arg2[%c0_72, %c0_73, %c0_74] : memref<2x8x32xf32, #tpu.memory_space<vmem>>, vector<2x8x32xf32>
      %130 = vector.shape_cast %129 : vector<2x8x32xf32> to vector<16x32xf32>
      %c0_75 = arith.constant 0 : index
      %c0_76 = arith.constant 0 : index
      %131 = vector.load %arg17[%c0_75, %c0_76] : memref<16x32xf32, #tpu.memory_space<vmem>>, vector<16x32xf32>
      tpu.vector_store %arg17[%c0_75, %c0_76], %130 {strides = array<i32>} : memref<16x32xf32, #tpu.memory_space<vmem>>, vector<16x32xf32>,
    } else {
    }
    %c0 = arith.constant 0 : index
    %c0_1 = arith.constant 0 : index
    %3 = vector.load %arg17[%c0, %c0_1] : memref<16x32xf32, #tpu.memory_space<vmem>>, vector<16x32xf32>
    %c0_2 = arith.constant 0 : index
    %c0_3 = arith.constant 0 : index
    %c0_4 = arith.constant 0 : index
    %4 = vector.load %arg3[%c0_2, %c0_3, %c0_4] : memref<1x32x96xf32, #tpu.memory_space<vmem>>, vector<1x32x96xf32>
    %5 = vector.shape_cast %4 : vector<1x32x96xf32> to vector<32x96xf32>
    %cst = arith.constant dense<0.000000e+00> : vector<16x96xf32>
    %6 = tpu.matmul %3, %5, %cst {dimension_numbers = #tpu.dot_dimension_numbers<[1], [0], [0], [1], [0, 0, 1, 1], [], []>} : vector<16x32xf32>, vector<32x96xf32>, vector<16x96xf32> -> vector<16x96xf32>
    %c0_5 = arith.constant 0 : index
    %c0_6 = arith.constant 0 : index
    %c0_7 = arith.constant 0 : index
    %7 = vector.load %arg4[%c0_5, %c0_6, %c0_7] : memref<1x1x96xf32, #tpu.memory_space<vmem>>, vector<1x1x96xf32>
    %8 = vector.shape_cast %7 : vector<1x1x96xf32> to vector<1x96xf32>
    %9 = vector.broadcast %8 : vector<1x96xf32> to vector<16x96xf32>
    %10 = arith.addf %6, %9 : vector<16x96xf32>
    %11 = vector.shape_cast %10 : vector<16x96xf32> to vector<2x8x96xf32>
    %12 = vector.extract_strided_slice %11 {offsets = [0, 0, 0], sizes = [2, 8, 16], strides = [1, 1, 1]} : vector<2x8x96xf32> to vector<2x8x16xf32>
    %13 = vector.extract_strided_slice %11 {offsets = [0, 0, 32], sizes = [2, 8, 16], strides = [1, 1, 1]} : vector<2x8x96xf32> to vector<2x8x16xf32>
    %14 = vector.extract_strided_slice %11 {offsets = [0, 0, 64], sizes = [2, 8, 16], strides = [1, 1, 1]} : vector<2x8x96xf32> to vector<2x8x16xf32>
    "tpu.trace_start"() <{level = 10 : i32, message = "bqd,bkd->bqk"}> : () -> ()
    %cst_8 = arith.constant dense<0.000000e+00> : vector<2x8x8xf32>
    %15 = tpu.matmul %12, %13, %cst_8 {dimension_numbers = #tpu.dot_dimension_numbers<[2], [2], [1], [1], [0, 0, 0, 1, 1, 1], [0], [0]>} : vector<2x8x16xf32>, vector<2x8x16xf32>, vector<2x8x8xf32> -> vector<2x8x8xf32>
    "tpu.trace_stop"() : () -> ()
    %cst_9 = arith.constant dense<0xFF800000> : vector<2x8xf32>
    %16 = vector.multi_reduction <maximumf>, %15, %cst_9 [2] : vector<2x8x8xf32> to vector<2x8xf32>
    %17 = vector.shape_cast %16 : vector<2x8xf32> to vector<2x8x1xf32>
    %18 = vector.broadcast %17 : vector<2x8x1xf32> to vector<2x8x8xf32>
    %19 = arith.subf %15, %18 : vector<2x8x8xf32>
    %20 = math.exp %19 : vector<2x8x8xf32>
    %cst_10 = arith.constant dense<0.000000e+00> : vector<2x8xf32>
    %21 = vector.multi_reduction <add>, %20, %cst_10 [2] : vector<2x8x8xf32> to vector<2x8xf32>
    %22 = vector.shape_cast %21 : vector<2x8xf32> to vector<2x8x1xf32>
    %23 = vector.broadcast %22 : vector<2x8x1xf32> to vector<2x8x8xf32>
    %24 = arith.divf %20, %23 : vector<2x8x8xf32>
    %c0_11 = arith.constant 0 : index
    %c0_12 = arith.constant 0 : index
    %c0_13 = arith.constant 0 : index
    %c0_14 = arith.constant 0 : index
    %c0_15 = arith.constant 0 : index
    %25 = vector.load %arg16[%c0_11, %c0_12, %c0_13, %c0_14, %c0_15] : memref<2x1x2x8x8xf32, #tpu.memory_space<vmem>>, vector<2x1x1x8x8xf32>
    %26 = vector.shape_cast %25 : vector<2x1x1x8x8xf32> to vector<2x8x8xf32>
    %27 = vector.shape_cast %24 : vector<2x8x8xf32> to vector<2x1x1x8x8xf32>
    tpu.vector_store %arg16[%c0_11, %c0_12, %c0_13, %c0_14, %c0_15], %27 {strides = array<i32>} : memref<2x1x2x8x8xf32, #tpu.memory_space<vmem>>, vector<2x1x1x8x8xf32>,
    "tpu.trace_start"() <{level = 10 : i32, message = "bqk,bkd->bqd"}> : () -> ()
    %cst_16 = arith.constant dense<0.000000e+00> : vector<2x8x16xf32>
    %28 = tpu.matmul %24, %14, %cst_16 {dimension_numbers = #tpu.dot_dimension_numbers<[2], [1], [1], [2], [0, 0, 0, 1, 1, 2], [0], [0]>} : vector<2x8x8xf32>, vector<2x8x16xf32>, vector<2x8x16xf32> -> vector<2x8x16xf32>
    "tpu.trace_stop"() : () -> ()
    %29 = vector.extract_strided_slice %11 {offsets = [0, 0, 16], sizes = [2, 8, 16], strides = [1, 1, 1]} : vector<2x8x96xf32> to vector<2x8x16xf32>
    %30 = vector.extract_strided_slice %11 {offsets = [0, 0, 48], sizes = [2, 8, 16], strides = [1, 1, 1]} : vector<2x8x96xf32> to vector<2x8x16xf32>
    %31 = vector.extract_strided_slice %11 {offsets = [0, 0, 80], sizes = [2, 8, 16], strides = [1, 1, 1]} : vector<2x8x96xf32> to vector<2x8x16xf32>
    "tpu.trace_start"() <{level = 10 : i32, message = "bqd,bkd->bqk"}> : () -> ()
    %cst_17 = arith.constant dense<0.000000e+00> : vector<2x8x8xf32>
    %32 = tpu.matmul %29, %30, %cst_17 {dimension_numbers = #tpu.dot_dimension_numbers<[2], [2], [1], [1], [0, 0, 0, 1, 1, 1], [0], [0]>} : vector<2x8x16xf32>, vector<2x8x16xf32>, vector<2x8x8xf32> -> vector<2x8x8xf32>
    "tpu.trace_stop"() : () -> ()
    %cst_18 = arith.constant dense<0xFF800000> : vector<2x8xf32>
    %33 = vector.multi_reduction <maximumf>, %32, %cst_18 [2] : vector<2x8x8xf32> to vector<2x8xf32>
    %34 = vector.shape_cast %33 : vector<2x8xf32> to vector<2x8x1xf32>
    %35 = vector.broadcast %34 : vector<2x8x1xf32> to vector<2x8x8xf32>
    %36 = arith.subf %32, %35 : vector<2x8x8xf32>
    %37 = math.exp %36 : vector<2x8x8xf32>
    %cst_19 = arith.constant dense<0.000000e+00> : vector<2x8xf32>
    %38 = vector.multi_reduction <add>, %37, %cst_19 [2] : vector<2x8x8xf32> to vector<2x8xf32>
    %39 = vector.shape_cast %38 : vector<2x8xf32> to vector<2x8x1xf32>
    %40 = vector.broadcast %39 : vector<2x8x1xf32> to vector<2x8x8xf32>
    %41 = arith.divf %37, %40 : vector<2x8x8xf32>
    %c0_20 = arith.constant 0 : index
    %c0_21 = arith.constant 0 : index
    %c1 = arith.constant 1 : index
    %c0_22 = arith.constant 0 : index
    %c0_23 = arith.constant 0 : index
    %42 = vector.load %arg16[%c0_20, %c0_21, %c1, %c0_22, %c0_23] : memref<2x1x2x8x8xf32, #tpu.memory_space<vmem>>, vector<2x1x1x8x8xf32>
    %43 = vector.shape_cast %42 : vector<2x1x1x8x8xf32> to vector<2x8x8xf32>
    %44 = vector.shape_cast %41 : vector<2x8x8xf32> to vector<2x1x1x8x8xf32>
    tpu.vector_store %arg16[%c0_20, %c0_21, %c1, %c0_22, %c0_23], %44 {strides = array<i32>} : memref<2x1x2x8x8xf32, #tpu.memory_space<vmem>>, vector<2x1x1x8x8xf32>,
    "tpu.trace_start"() <{level = 10 : i32, message = "bqk,bkd->bqd"}> : () -> ()
    %cst_24 = arith.constant dense<0.000000e+00> : vector<2x8x16xf32>
    %45 = tpu.matmul %41, %31, %cst_24 {dimension_numbers = #tpu.dot_dimension_numbers<[2], [1], [1], [2], [0, 0, 0, 1, 1, 2], [0], [0]>} : vector<2x8x8xf32>, vector<2x8x16xf32>, vector<2x8x16xf32> -> vector<2x8x16xf32>
    "tpu.trace_stop"() : () -> ()
    %46 = tpu.concatenate %28, %45 in 2 : vector<2x8x16xf32>, vector<2x8x16xf32> -> vector<2x8x32xf32>
    %47 = vector.shape_cast %46 : vector<2x8x32xf32> to vector<16x32xf32>
    %c0_25 = arith.constant 0 : index
    %c0_26 = arith.constant 0 : index
    %c0_27 = arith.constant 0 : index
    %48 = vector.load %arg5[%c0_25, %c0_26, %c0_27] : memref<1x32x32xf32, #tpu.memory_space<vmem>>, vector<1x32x32xf32>
    %49 = vector.shape_cast %48 : vector<1x32x32xf32> to vector<32x32xf32>
    %cst_28 = arith.constant dense<0.000000e+00> : vector<16x32xf32>
    %50 = tpu.matmul %47, %49, %cst_28 {dimension_numbers = #tpu.dot_dimension_numbers<[1], [0], [0], [1], [0, 0, 1, 1], [], []>} : vector<16x32xf32>, vector<32x32xf32>, vector<16x32xf32> -> vector<16x32xf32>
    %c0_29 = arith.constant 0 : index
    %c0_30 = arith.constant 0 : index
    %c0_31 = arith.constant 0 : index
    %51 = vector.load %arg6[%c0_29, %c0_30, %c0_31] : memref<1x1x32xf32, #tpu.memory_space<vmem>>, vector<1x1x32xf32>
    %52 = vector.shape_cast %51 : vector<1x1x32xf32> to vector<1x32xf32>
    %53 = vector.broadcast %52 : vector<1x32xf32> to vector<16x32xf32>
    %54 = arith.addf %50, %53 : vector<16x32xf32>
    %55 = arith.addf %54, %3 : vector<16x32xf32>
    %cst_32 = arith.constant dense<0.000000e+00> : vector<16xf32>
    %56 = vector.multi_reduction <add>, %55, %cst_32 [1] : vector<16x32xf32> to vector<16xf32>
    %57 = vector.shape_cast %56 : vector<16xf32> to vector<16x1xf32>
    %cst_33 = arith.constant 3.200000e+01 : f32
    %58 = vector.broadcast %cst_33 : f32 to vector<16x1xf32>
    %59 = arith.divf %57, %58 : vector<16x1xf32>
    %60 = vector.broadcast %59 : vector<16x1xf32> to vector<16x32xf32>
    %61 = arith.subf %55, %60 : vector<16x32xf32>
    %62 = arith.mulf %61, %61 : vector<16x32xf32>
    %cst_34 = arith.constant dense<0.000000e+00> : vector<16xf32>
    %63 = vector.multi_reduction <add>, %62, %cst_34 [1] : vector<16x32xf32> to vector<16xf32>
    %64 = vector.shape_cast %63 : vector<16xf32> to vector<16x1xf32>
    %cst_35 = arith.constant 3.200000e+01 : f32
    %65 = vector.broadcast %cst_35 : f32 to vector<16x1xf32>
    %66 = arith.divf %64, %65 : vector<16x1xf32>
    %67 = vector.broadcast %59 : vector<16x1xf32> to vector<16x32xf32>
    %68 = arith.subf %55, %67 : vector<16x32xf32>
    %cst_36 = arith.constant 9.99999974E-6 : f32
    %69 = vector.broadcast %cst_36 : f32 to vector<16x1xf32>
    %70 = arith.addf %66, %69 : vector<16x1xf32>
    %71 = math.rsqrt %70 : vector<16x1xf32>
    %72 = vector.broadcast %71 : vector<16x1xf32> to vector<16x32xf32>
    %73 = arith.mulf %68, %72 : vector<16x32xf32>
    %c0_37 = arith.constant 0 : index
    %c0_38 = arith.constant 0 : index
    %c0_39 = arith.constant 0 : index
    %74 = vector.load %arg7[%c0_37, %c0_38, %c0_39] : memref<1x1x32xf32, #tpu.memory_space<vmem>>, vector<1x1x32xf32>
    %75 = vector.shape_cast %74 : vector<1x1x32xf32> to vector<1x32xf32>
    %76 = vector.broadcast %75 : vector<1x32xf32> to vector<16x32xf32>
    %77 = arith.mulf %73, %76 : vector<16x32xf32>
    %c0_40 = arith.constant 0 : index
    %c0_41 = arith.constant 0 : index
    %c0_42 = arith.constant 0 : index
    %78 = vector.load %arg8[%c0_40, %c0_41, %c0_42] : memref<1x1x32xf32, #tpu.memory_space<vmem>>, vector<1x1x32xf32>
    %79 = vector.shape_cast %78 : vector<1x1x32xf32> to vector<1x32xf32>
    %80 = vector.broadcast %79 : vector<1x32xf32> to vector<16x32xf32>
    %81 = arith.addf %77, %80 : vector<16x32xf32>
    %c0_43 = arith.constant 0 : index
    %c0_44 = arith.constant 0 : index
    %c0_45 = arith.constant 0 : index
    %82 = vector.load %arg9[%c0_43, %c0_44, %c0_45] : memref<1x32x64xf32, #tpu.memory_space<vmem>>, vector<1x32x64xf32>
    %83 = vector.shape_cast %82 : vector<1x32x64xf32> to vector<32x64xf32>
    %cst_46 = arith.constant dense<0.000000e+00> : vector<16x64xf32>
    %84 = tpu.matmul %81, %83, %cst_46 {dimension_numbers = #tpu.dot_dimension_numbers<[1], [0], [0], [1], [0, 0, 1, 1], [], []>} : vector<16x32xf32>, vector<32x64xf32>, vector<16x64xf32> -> vector<16x64xf32>
    %c0_47 = arith.constant 0 : index
    %c0_48 = arith.constant 0 : index
    %c0_49 = arith.constant 0 : index
    %85 = vector.load %arg10[%c0_47, %c0_48, %c0_49] : memref<1x1x64xf32, #tpu.memory_space<vmem>>, vector<1x1x64xf32>
    %86 = vector.shape_cast %85 : vector<1x1x64xf32> to vector<1x64xf32>
    %87 = vector.broadcast %86 : vector<1x64xf32> to vector<16x64xf32>
    %88 = arith.addf %84, %87 : vector<16x64xf32>
    %cst_50 = arith.constant 0.000000e+00 : f32
    %89 = vector.broadcast %cst_50 : f32 to vector<16x64xf32>
    %90 = arith.maximumf %88, %89 : vector<16x64xf32>
    %c0_51 = arith.constant 0 : index
    %c0_52 = arith.constant 0 : index
    %c0_53 = arith.constant 0 : index
    %91 = vector.load %arg11[%c0_51, %c0_52, %c0_53] : memref<1x64x32xf32, #tpu.memory_space<vmem>>, vector<1x64x32xf32>
    %92 = vector.shape_cast %91 : vector<1x64x32xf32> to vector<64x32xf32>
    %cst_54 = arith.constant dense<0.000000e+00> : vector<16x32xf32>
    %93 = tpu.matmul %90, %92, %cst_54 {dimension_numbers = #tpu.dot_dimension_numbers<[1], [0], [0], [1], [0, 0, 1, 1], [], []>} : vector<16x64xf32>, vector<64x32xf32>, vector<16x32xf32> -> vector<16x32xf32>
    %c0_55 = arith.constant 0 : index
    %c0_56 = arith.constant 0 : index
    %c0_57 = arith.constant 0 : index
    %94 = vector.load %arg12[%c0_55, %c0_56, %c0_57] : memref<1x1x32xf32, #tpu.memory_space<vmem>>, vector<1x1x32xf32>
    %95 = vector.shape_cast %94 : vector<1x1x32xf32> to vector<1x32xf32>
    %96 = vector.broadcast %95 : vector<1x32xf32> to vector<16x32xf32>
    %97 = arith.addf %93, %96 : vector<16x32xf32>
    %98 = arith.addf %97, %81 : vector<16x32xf32>
    %cst_58 = arith.constant dense<0.000000e+00> : vector<16xf32>
    %99 = vector.multi_reduction <add>, %98, %cst_58 [1] : vector<16x32xf32> to vector<16xf32>
    %100 = vector.shape_cast %99 : vector<16xf32> to vector<16x1xf32>
    %cst_59 = arith.constant 3.200000e+01 : f32
    %101 = vector.broadcast %cst_59 : f32 to vector<16x1xf32>
    %102 = arith.divf %100, %101 : vector<16x1xf32>
    %103 = vector.broadcast %102 : vector<16x1xf32> to vector<16x32xf32>
    %104 = arith.subf %98, %103 : vector<16x32xf32>
    %105 = arith.mulf %104, %104 : vector<16x32xf32>
    %cst_60 = arith.constant dense<0.000000e+00> : vector<16xf32>
    %106 = vector.multi_reduction <add>, %105, %cst_60 [1] : vector<16x32xf32> to vector<16xf32>
    %107 = vector.shape_cast %106 : vector<16xf32> to vector<16x1xf32>
    %cst_61 = arith.constant 3.200000e+01 : f32
    %108 = vector.broadcast %cst_61 : f32 to vector<16x1xf32>
    %109 = arith.divf %107, %108 : vector<16x1xf32>
    %110 = vector.broadcast %102 : vector<16x1xf32> to vector<16x32xf32>
    %111 = arith.subf %98, %110 : vector<16x32xf32>
    %cst_62 = arith.constant 9.99999974E-6 : f32
    %112 = vector.broadcast %cst_62 : f32 to vector<16x1xf32>
    %113 = arith.addf %109, %112 : vector<16x1xf32>
    %114 = math.rsqrt %113 : vector<16x1xf32>
    %115 = vector.broadcast %114 : vector<16x1xf32> to vector<16x32xf32>
    %116 = arith.mulf %111, %115 : vector<16x32xf32>
    %c0_63 = arith.constant 0 : index
    %c0_64 = arith.constant 0 : index
    %c0_65 = arith.constant 0 : index
    %117 = vector.load %arg13[%c0_63, %c0_64, %c0_65] : memref<1x1x32xf32, #tpu.memory_space<vmem>>, vector<1x1x32xf32>
    %118 = vector.shape_cast %117 : vector<1x1x32xf32> to vector<1x32xf32>
    %119 = vector.broadcast %118 : vector<1x32xf32> to vector<16x32xf32>
    %120 = arith.mulf %116, %119 : vector<16x32xf32>
    %c0_66 = arith.constant 0 : index
    %c0_67 = arith.constant 0 : index
    %c0_68 = arith.constant 0 : index
    %121 = vector.load %arg14[%c0_66, %c0_67, %c0_68] : memref<1x1x32xf32, #tpu.memory_space<vmem>>, vector<1x1x32xf32>
    %122 = vector.shape_cast %121 : vector<1x1x32xf32> to vector<1x32xf32>
    %123 = vector.broadcast %122 : vector<1x32xf32> to vector<16x32xf32>
    %124 = arith.addf %120, %123 : vector<16x32xf32>
    %c0_69 = arith.constant 0 : index
    %c0_70 = arith.constant 0 : index
    %125 = vector.load %arg17[%c0_69, %c0_70] : memref<16x32xf32, #tpu.memory_space<vmem>>, vector<16x32xf32>
    tpu.vector_store %arg17[%c0_69, %c0_70], %124 {strides = array<i32>} : memref<16x32xf32, #tpu.memory_space<vmem>>, vector<16x32xf32>,
    %c3_i32 = arith.constant 3 : i32
    %126 = arith.cmpi eq, %arg1, %c3_i32 : i32
    %127 = arith.extui %126 : i1 to i32
    %c0_i32_71 = arith.constant 0 : i32
    %128 = arith.cmpi ne, %127, %c0_i32_71 : i32
    scf.if %128 {
      %129 = vector.shape_cast %124 : vector<16x32xf32> to vector<2x8x32xf32>
      %c0_72 = arith.constant 0 : index
      %c0_73 = arith.constant 0 : index
      %c0_74 = arith.constant 0 : index
      %130 = vector.load %arg15[%c0_72, %c0_73, %c0_74] : memref<2x8x32xf32, #tpu.memory_space<vmem>>, vector<2x8x32xf32>
      tpu.vector_store %arg15[%c0_72, %c0_73, %c0_74], %129 {strides = array<i32>} : memref<2x8x32xf32, #tpu.memory_space<vmem>>, vector<2x8x32xf32>,
    } else {
    }
    return
  }
  func.func @transform_0(%arg0: i32, %arg1: i32) -> (i32, i32, i32) {
    %c0_i32 = arith.constant 0 : i32
    %c0_i32_0 = arith.constant 0 : i32
    %c0_i32_1 = arith.constant 0 : i32
    return %arg0, %c0_i32, %c0_i32_0 : i32, i32, i32
  }
  func.func @transform_1(%arg0: i32, %arg1: i32) -> (i32, i32, i32) {
    %c0_i32 = arith.constant 0 : i32
    %c0_i32_0 = arith.constant 0 : i32
    %c0_i32_1 = arith.constant 0 : i32
    return %arg1, %c0_i32, %c0_i32_0 : i32, i32, i32
  }
  func.func @transform_2(%arg0: i32, %arg1: i32) -> (i32, i32, i32) {
    %c0_i32 = arith.constant 0 : i32
    %c0_i32_0 = arith.constant 0 : i32
    %c0_i32_1 = arith.constant 0 : i32
    return %arg1, %c0_i32, %c0_i32_0 : i32, i32, i32
  }
  func.func @transform_3(%arg0: i32, %arg1: i32) -> (i32, i32, i32) {
    %c0_i32 = arith.constant 0 : i32
    %c0_i32_0 = arith.constant 0 : i32
    %c0_i32_1 = arith.constant 0 : i32
    return %arg1, %c0_i32, %c0_i32_0 : i32, i32, i32
  }
  func.func @transform_4(%arg0: i32, %arg1: i32) -> (i32, i32, i32) {
    %c0_i32 = arith.constant 0 : i32
    %c0_i32_0 = arith.constant 0 : i32
    %c0_i32_1 = arith.constant 0 : i32
    return %arg1, %c0_i32, %c0_i32_0 : i32, i32, i32
  }
  func.func @transform_5(%arg0: i32, %arg1: i32) -> (i32, i32, i32) {
    %c0_i32 = arith.constant 0 : i32
    %c0_i32_0 = arith.constant 0 : i32
    %c0_i32_1 = arith.constant 0 : i32
    return %arg1, %c0_i32, %c0_i32_0 : i32, i32, i32
  }
  func.func @transform_6(%arg0: i32, %arg1: i32) -> (i32, i32, i32) {
    %c0_i32 = arith.constant 0 : i32
    %c0_i32_0 = arith.constant 0 : i32
    %c0_i32_1 = arith.constant 0 : i32
    return %arg1, %c0_i32, %c0_i32_0 : i32, i32, i32
  }
  func.func @transform_7(%arg0: i32, %arg1: i32) -> (i32, i32, i32) {
    %c0_i32 = arith.constant 0 : i32
    %c0_i32_0 = arith.constant 0 : i32
    %c0_i32_1 = arith.constant 0 : i32
    return %arg1, %c0_i32, %c0_i32_0 : i32, i32, i32
  }
  func.func @transform_8(%arg0: i32, %arg1: i32) -> (i32, i32, i32) {
    %c0_i32 = arith.constant 0 : i32
    %c0_i32_0 = arith.constant 0 : i32
    %c0_i32_1 = arith.constant 0 : i32
    return %arg1, %c0_i32, %c0_i32_0 : i32, i32, i32
  }
  func.func @transform_9(%arg0: i32, %arg1: i32) -> (i32, i32, i32) {
    %c0_i32 = arith.constant 0 : i32
    %c0_i32_0 = arith.constant 0 : i32
    %c0_i32_1 = arith.constant 0 : i32
    return %arg1, %c0_i32, %c0_i32_0 : i32, i32, i32
  }
  func.func @transform_10(%arg0: i32, %arg1: i32) -> (i32, i32, i32) {
    %c0_i32 = arith.constant 0 : i32
    %c0_i32_0 = arith.constant 0 : i32
    %c0_i32_1 = arith.constant 0 : i32
    return %arg1, %c0_i32, %c0_i32_0 : i32, i32, i32
  }
  func.func @transform_11(%arg0: i32, %arg1: i32) -> (i32, i32, i32) {
    %c0_i32 = arith.constant 0 : i32
    %c0_i32_0 = arith.constant 0 : i32
    %c0_i32_1 = arith.constant 0 : i32
    return %arg1, %c0_i32, %c0_i32_0 : i32, i32, i32
  }
  func.func @transform_12(%arg0: i32, %arg1: i32) -> (i32, i32, i32) {
    %c0_i32 = arith.constant 0 : i32
    %c0_i32_0 = arith.constant 0 : i32
    %c0_i32_1 = arith.constant 0 : i32
    return %arg1, %c0_i32, %c0_i32_0 : i32, i32, i32
  }
  func.func @transform_13(%arg0: i32, %arg1: i32) -> (i32, i32, i32) {
    %c0_i32 = arith.constant 0 : i32
    %c0_i32_0 = arith.constant 0 : i32
    %c0_i32_1 = arith.constant 0 : i32
    return %arg0, %c0_i32, %c0_i32_0 : i32, i32, i32
  }
  func.func @transform_14(%arg0: i32, %arg1: i32) -> (i32, i32, i32, i32, i32) {
    %c0_i32 = arith.constant 0 : i32
    %c0_i32_0 = arith.constant 0 : i32
    %c0_i32_1 = arith.constant 0 : i32
    %c0_i32_2 = arith.constant 0 : i32
    return %arg0, %arg1, %c0_i32, %c0_i32_0, %c0_i32_1 : i32, i32, i32, i32, i32
  }
}

</mosaic_0001>

<llo_original>
// kernel: tpu_custom_call.1
$region0: #{tpu_custom_call.1}
  #allocation0 [shape = 'u32[]', space=smem, size = 0x4, offset = 0x4, fixed_abs, tag = 'smem constant byte address 0x4 - core index']
  #allocation1 [shape = 'u32[144,128]{1,0:T(1,128)}', space=vmem, size = 0x12000, scoped, tag = 'internal scratch']
  #allocation2 [shape = 'f32[16,32]{1,0:T(8,128)}', space=vmem, size = 0x2000, scoped, tag = 'scratch operand']
  #allocation9 [shape = 's32[]', space=sflag, size = 0x4, offset = 0, fixed_abs, tag = 'sflag constant byte address 0x0 - dummy sync flag']
  %s0 = inlined_call_operand.hbm [shape: f32[2,8,32], index: 0, kind: input, shape index: {}]
  %s1 = inlined_call_operand.vmem [shape: f32[4,32,96], index: 1, kind: input, shape index: {}]
  %s2 = inlined_call_operand.vmem [shape: f32[4,1,96], index: 2, kind: input, shape index: {}]
  %s3 = inlined_call_operand.vmem [shape: f32[4,32,32], index: 3, kind: input, shape index: {}]
  %s4 = inlined_call_operand.vmem [shape: f32[4,1,32], index: 4, kind: input, shape index: {}]
  %s5 = inlined_call_operand.vmem [shape: f32[4,1,32], index: 5, kind: input, shape index: {}]
  %s6 = inlined_call_operand.vmem [shape: f32[4,1,32], index: 6, kind: input, shape index: {}]
  %s7 = inlined_call_operand.vmem [shape: f32[4,32,64], index: 7, kind: input, shape index: {}]
  %s8 = inlined_call_operand.vmem [shape: f32[4,1,64], index: 8, kind: input, shape index: {}]
  %s9 = inlined_call_operand.vmem [shape: f32[4,64,32], index: 9, kind: input, shape index: {}]
  %s10 = inlined_call_operand.vmem [shape: f32[4,1,32], index: 10, kind: input, shape index: {}]
  %s11 = inlined_call_operand.vmem [shape: f32[4,1,32], index: 11, kind: input, shape index: {}]
  %s12 = inlined_call_operand.vmem [shape: f32[4,1,32], index: 12, kind: input, shape index: {}]
  %s13 = inlined_call_operand.hbm [shape: f32[2,8,32], index: 13, kind: output, shape index: {0}]
  %s14 = inlined_call_operand.hbm [shape: f32[2,4,2,8,8], index: 14, kind: output, shape index: {1}]
  %15 = xla_tuple %s13, %s14
  %s16 = sld [smem:[#allocation0]]
  $region105: #{tpu_custom_call.1} parent=0
    _
  %s18 = ssub.s32 1, %s16
  %s19 = scalar_select 0, %s18, %s16
  $region1: #{tpu_custom_call.1} parent=0
    #allocation3 [shape = 'u8[8192]{0}', space=vmem, size = 0x2000, scoped, tag = 'input window, operand 0, single buffered']
    #allocation4 [shape = 's32[2]{0}', space=sflag, size = 0x8, scoped, tag = 'scoped memory for tpu_custom_call.1']
    #allocation5 [shape = 's32[2]{0}', space=sflag, size = 0x8, scoped, tag = 'scoped memory for tpu_custom_call.1']
    #allocation6 [shape = 'u8[8192]{0}', space=vmem, size = 0x2000, scoped, tag = 'output window, operand 0, single buffered']
    #allocation7 [shape = 'u8[32768]{0}', space=vmem, size = 0x8000, scoped, tag = 'output window, operand 1']
    #allocation8 [shape = 's32[2]{0}', space=sflag, size = 0x8, scoped, tag = 'scoped memory for tpu_custom_call.1']
    %20 = vsyncpa [#allocation4], 0
    %21 = vsyncpa [#allocation5], 0
    %22 = vsyncpa [#allocation8], 0
    %s23 = scalar_lea.sflag [#allocation8], 1
    %24 = vsyncpa %s23, 0
    loop: start=0, step=1, limit=6
    $region2: #{tpu_custom_call.1} parent=1 // loop_pre_header
      _
    $region3: #{tpu_custom_call.1} parent=1 // loop_header
      %s26 = sphi 0, %s30
      %p27 = scmp.ge.s32.totalorder %s26, 6
      %s33 = sphi 0, %s45
      %s34 = sphi 0, %s41
      %s35 = sphi 0, %s33
      %s36 = sphi 0, %s34
      %s37 = sphi 0, %s35
      %s38 = sphi 0, %s36
      %s48 = sphi 0, %s50
      %s51 = sphi 0, %s48
      %s52 = sphi 0, %s51
      %s68 = sphi 0, %s52
      %s74 = sphi 0, %s76
      %s77 = sphi 0, %s74
      %s78 = sphi 0, %s77
      %s94 = sphi 0, %s78
      %s100 = sphi 0, %s102
      %s103 = sphi 0, %s100
      %s104 = sphi 0, %s103
      %s120 = sphi 0, %s104
      %s126 = sphi 0, %s128
      %s129 = sphi 0, %s126
      %s130 = sphi 0, %s129
      %s146 = sphi 0, %s130
      %s152 = sphi 0, %s154
      %s155 = sphi 0, %s152
      %s156 = sphi 0, %s155
      %s172 = sphi 0, %s156
      %s178 = sphi 0, %s180
      %s181 = sphi 0, %s178
      %s182 = sphi 0, %s181
      %s198 = sphi 0, %s182
      %s204 = sphi 0, %s206
      %s207 = sphi 0, %s204
      %s208 = sphi 0, %s207
      %s224 = sphi 0, %s208
      %s230 = sphi 0, %s232
      %s233 = sphi 0, %s230
      %s234 = sphi 0, %s233
      %s250 = sphi 0, %s234
      %s256 = sphi 0, %s258
      %s259 = sphi 0, %s256
      %s260 = sphi 0, %s259
      %s276 = sphi 0, %s260
      %s282 = sphi 0, %s284
      %s285 = sphi 0, %s282
      %s286 = sphi 0, %s285
      %s302 = sphi 0, %s286
      %s308 = sphi 0, %s310
      %s311 = sphi 0, %s308
      %s312 = sphi 0, %s311
      %s328 = sphi 0, %s312
      %s334 = sphi 0, %s336
      %s337 = sphi 0, %s334
      %s338 = sphi 0, %s337
      %s354 = sphi 0, %s338
      %s360 = sphi 0, %s362
      %s363 = sphi 0, %s360
      %s364 = sphi 0, %s363
      %s380 = sphi 0, %s364
      %s386 = sphi 0, %s388
      %s389 = sphi 0, %s386
      %s390 = sphi 0, %s389
      %s406 = sphi 0, %s390
      %s414 = sphi 0, %s416
      %s417 = sphi 0, %s414
      %s418 = sphi 0, %s417
      %s434 = sphi 0, %s418
    $region4: #{tpu_custom_call.1} parent=1 // loop_header_branch
      %29 = sbr.rel (%p27) target = $region8
    $region5: #{tpu_custom_call.1} parent=1 // loop_body
      %s31 = ssub.s32 %s26, 1
      %s32 = ssub.s32 %s26, 2
      %s39 = sadd.s32 1, %s34
      %p40 = scmp.ge.s32.totalorder %s39, 4
      %s41 = scalar_select %p40, 0, %s39
      %s42 = sadd.s32 1, %s33
      %s43 = scalar_select %p40, %s42, %s33
      %p44 = scmp.ge.s32.totalorder %s43, 1
      %s45 = scalar_select %p44, 0, %s43
      %s46 = ssub.s32 %s33, %s45
      %p47 = scmp.eq.s32.totalorder %s46, 0
      %s49 = sadd.s32 %s48, 1
      %s50 = scalar_select %p47, %s48, %s49
      %p53 = pneg %p47
      %p54 = scmp.eq.s32.totalorder %s26, 3
      %p55 = por %p53, %p54
      %p56 = scmp.ne.s32.totalorder %s48, %s51
      %p57 = scmp.eq.s32.totalorder %s26, 0
      %p58 = por %p56, %p57
      %p59 = scmp.ne.s32.totalorder %s48, %s51
      %p60 = scmp.eq.s32.totalorder %s31, 3
      %p61 = por %p59, %p60
      %p62 = scmp.ne.s32.totalorder %s51, %s52
      %p63 = scmp.eq.s32.totalorder %s31, 0
      %p64 = por %p62, %p63
      %p65 = scmp.ne.s32.totalorder %s51, %s52
      %p66 = scmp.eq.s32.totalorder %s32, 3
      %p67 = por %p65, %p66
      %p69 = scmp.ne.s32.totalorder %s52, %s68
      %p70 = scmp.eq.s32.totalorder %s32, 0
      %p71 = por %p69, %p70
      %s72 = ssub.s32 %s34, %s41
      %p73 = scmp.eq.s32.totalorder %s72, 0
      %s75 = sadd.s32 %s74, 1
      %s76 = scalar_select %p73, %s74, %s75
      %p79 = pneg %p73
      %p80 = scmp.eq.s32.totalorder %s26, 3
      %p81 = por %p79, %p80
      %p82 = scmp.ne.s32.totalorder %s74, %s77
      %p83 = scmp.eq.s32.totalorder %s26, 0
      %p84 = por %p82, %p83
      %p85 = scmp.ne.s32.totalorder %s74, %s77
      %p86 = scmp.eq.s32.totalorder %s31, 3
      %p87 = por %p85, %p86
      %p88 = scmp.ne.s32.totalorder %s77, %s78
      %p89 = scmp.eq.s32.totalorder %s31, 0
      %p90 = por %p88, %p89
      %p91 = scmp.ne.s32.totalorder %s77, %s78
      %p92 = scmp.eq.s32.totalorder %s32, 3
      %p93 = por %p91, %p92
      %p95 = scmp.ne.s32.totalorder %s78, %s94
      %p96 = scmp.eq.s32.totalorder %s32, 0
      %p97 = por %p95, %p96
      %s98 = ssub.s32 %s34, %s41
      %p99 = scmp.eq.s32.totalorder %s98, 0
      %s101 = sadd.s32 %s100, 1
      %s102 = scalar_select %p99, %s100, %s101
      %p105 = pneg %p99
      %p106 = scmp.eq.s32.totalorder %s26, 3
      %p107 = por %p105, %p106
      %p108 = scmp.ne.s32.totalorder %s100, %s103
      %p109 = scmp.eq.s32.totalorder %s26, 0
      %p110 = por %p108, %p109
      %p111 = scmp.ne.s32.totalorder %s100, %s103
      %p112 = scmp.eq.s32.totalorder %s31, 3
      %p113 = por %p111, %p112
      %p114 = scmp.ne.s32.totalorder %s103, %s104
      %p115 = scmp.eq.s32.totalorder %s31, 0
      %p116 = por %p114, %p115
      %p117 = scmp.ne.s32.totalorder %s103, %s104
      %p118 = scmp.eq.s32.totalorder %s32, 3
      %p119 = por %p117, %p118
      %p121 = scmp.ne.s32.totalorder %s104, %s120
      %p122 = scmp.eq.s32.totalorder %s32, 0
      %p123 = por %p121, %p122
      %s124 = ssub.s32 %s34, %s41
      %p125 = scmp.eq.s32.totalorder %s124, 0
      %s127 = sadd.s32 %s126, 1
      %s128 = scalar_select %p125, %s126, %s127
      %p131 = pneg %p125
      %p132 = scmp.eq.s32.totalorder %s26, 3
      %p133 = por %p131, %p132
      %p134 = scmp.ne.s32.totalorder %s126, %s129
      %p135 = scmp.eq.s32.totalorder %s26, 0
      %p136 = por %p134, %p135
      %p137 = scmp.ne.s32.totalorder %s126, %s129
      %p138 = scmp.eq.s32.totalorder %s31, 3
      %p139 = por %p137, %p138
      %p140 = scmp.ne.s32.totalorder %s129, %s130
      %p141 = scmp.eq.s32.totalorder %s31, 0
      %p142 = por %p140, %p141
      %p143 = scmp.ne.s32.totalorder %s129, %s130
      %p144 = scmp.eq.s32.totalorder %s32, 3
      %p145 = por %p143, %p144
      %p147 = scmp.ne.s32.totalorder %s130, %s146
      %p148 = scmp.eq.s32.totalorder %s32, 0
      %p149 = por %p147, %p148
      %s150 = ssub.s32 %s34, %s41
      %p151 = scmp.eq.s32.totalorder %s150, 0
      %s153 = sadd.s32 %s152, 1
      %s154 = scalar_select %p151, %s152, %s153
      %p157 = pneg %p151
      %p158 = scmp.eq.s32.totalorder %s26, 3
      %p159 = por %p157, %p158
      %p160 = scmp.ne.s32.totalorder %s152, %s155
      %p161 = scmp.eq.s32.totalorder %s26, 0
      %p162 = por %p160, %p161
      %p163 = scmp.ne.s32.totalorder %s152, %s155
      %p164 = scmp.eq.s32.totalorder %s31, 3
      %p165 = por %p163, %p164
      %p166 = scmp.ne.s32.totalorder %s155, %s156
      %p167 = scmp.eq.s32.totalorder %s31, 0
      %p168 = por %p166, %p167
      %p169 = scmp.ne.s32.totalorder %s155, %s156
      %p170 = scmp.eq.s32.totalorder %s32, 3
      %p171 = por %p169, %p170
      %p173 = scmp.ne.s32.totalorder %s156, %s172
      %p174 = scmp.eq.s32.totalorder %s32, 0
      %p175 = por %p173, %p174
      %s176 = ssub.s32 %s34, %s41
      %p177 = scmp.eq.s32.totalorder %s176, 0
      %s179 = sadd.s32 %s178, 1
      %s180 = scalar_select %p177, %s178, %s179
      %p183 = pneg %p177
      %p184 = scmp.eq.s32.totalorder %s26, 3
      %p185 = por %p183, %p184
      %p186 = scmp.ne.s32.totalorder %s178, %s181
      %p187 = scmp.eq.s32.totalorder %s26, 0
      %p188 = por %p186, %p187
      %p189 = scmp.ne.s32.totalorder %s178, %s181
      %p190 = scmp.eq.s32.totalorder %s31, 3
      %p191 = por %p189, %p190
      %p192 = scmp.ne.s32.totalorder %s181, %s182
      %p193 = scmp.eq.s32.totalorder %s31, 0
      %p194 = por %p192, %p193
      %p195 = scmp.ne.s32.totalorder %s181, %s182
      %p196 = scmp.eq.s32.totalorder %s32, 3
      %p197 = por %p195, %p196
      %p199 = scmp.ne.s32.totalorder %s182, %s198
      %p200 = scmp.eq.s32.totalorder %s32, 0
      %p201 = por %p199, %p200
      %s202 = ssub.s32 %s34, %s41
      %p203 = scmp.eq.s32.totalorder %s202, 0
      %s205 = sadd.s32 %s204, 1
      %s206 = scalar_select %p203, %s204, %s205
      %p209 = pneg %p203
      %p210 = scmp.eq.s32.totalorder %s26, 3
      %p211 = por %p209, %p210
      %p212 = scmp.ne.s32.totalorder %s204, %s207
      %p213 = scmp.eq.s32.totalorder %s26, 0
      %p214 = por %p212, %p213
      %p215 = scmp.ne.s32.totalorder %s204, %s207
      %p216 = scmp.eq.s32.totalorder %s31, 3
      %p217 = por %p215, %p216
      %p218 = scmp.ne.s32.totalorder %s207, %s208
      %p219 = scmp.eq.s32.totalorder %s31, 0
      %p220 = por %p218, %p219
      %p221 = scmp.ne.s32.totalorder %s207, %s208
      %p222 = scmp.eq.s32.totalorder %s32, 3
      %p223 = por %p221, %p222
      %p225 = scmp.ne.s32.totalorder %s208, %s224
      %p226 = scmp.eq.s32.totalorder %s32, 0
      %p227 = por %p225, %p226
      %s228 = ssub.s32 %s34, %s41
      %p229 = scmp.eq.s32.totalorder %s228, 0
      %s231 = sadd.s32 %s230, 1
      %s232 = scalar_select %p229, %s230, %s231
      %p235 = pneg %p229
      %p236 = scmp.eq.s32.totalorder %s26, 3
      %p237 = por %p235, %p236
      %p238 = scmp.ne.s32.totalorder %s230, %s233
      %p239 = scmp.eq.s32.totalorder %s26, 0
      %p240 = por %p238, %p239
      %p241 = scmp.ne.s32.totalorder %s230, %s233
      %p242 = scmp.eq.s32.totalorder %s31, 3
      %p243 = por %p241, %p242
      %p244 = scmp.ne.s32.totalorder %s233, %s234
      %p245 = scmp.eq.s32.totalorder %s31, 0
      %p246 = por %p244, %p245
      %p247 = scmp.ne.s32.totalorder %s233, %s234
      %p248 = scmp.eq.s32.totalorder %s32, 3
      %p249 = por %p247, %p248
      %p251 = scmp.ne.s32.totalorder %s234, %s250
      %p252 = scmp.eq.s32.totalorder %s32, 0
      %p253 = por %p251, %p252
      %s254 = ssub.s32 %s34, %s41
      %p255 = scmp.eq.s32.totalorder %s254, 0
      %s257 = sadd.s32 %s256, 1
      %s258 = scalar_select %p255, %s256, %s257
      %p261 = pneg %p255
      %p262 = scmp.eq.s32.totalorder %s26, 3
      %p263 = por %p261, %p262
      %p264 = scmp.ne.s32.totalorder %s256, %s259
      %p265 = scmp.eq.s32.totalorder %s26, 0
      %p266 = por %p264, %p265
      %p267 = scmp.ne.s32.totalorder %s256, %s259
      %p268 = scmp.eq.s32.totalorder %s31, 3
      %p269 = por %p267, %p268
      %p270 = scmp.ne.s32.totalorder %s259, %s260
      %p271 = scmp.eq.s32.totalorder %s31, 0
      %p272 = por %p270, %p271
      %p273 = scmp.ne.s32.totalorder %s259, %s260
      %p274 = scmp.eq.s32.totalorder %s32, 3
      %p275 = por %p273, %p274
      %p277 = scmp.ne.s32.totalorder %s260, %s276
      %p278 = scmp.eq.s32.totalorder %s32, 0
      %p279 = por %p277, %p278
      %s280 = ssub.s32 %s34, %s41
      %p281 = scmp.eq.s32.totalorder %s280, 0
      %s283 = sadd.s32 %s282, 1
      %s284 = scalar_select %p281, %s282, %s283
      %p287 = pneg %p281
      %p288 = scmp.eq.s32.totalorder %s26, 3
      %p289 = por %p287, %p288
      %p290 = scmp.ne.s32.totalorder %s282, %s285
      %p291 = scmp.eq.s32.totalorder %s26, 0
      %p292 = por %p290, %p291
      %p293 = scmp.ne.s32.totalorder %s282, %s285
      %p294 = scmp.eq.s32.totalorder %s31, 3
      %p295 = por %p293, %p294
      %p296 = scmp.ne.s32.totalorder %s285, %s286
      %p297 = scmp.eq.s32.totalorder %s31, 0
      %p298 = por %p296, %p297
      %p299 = scmp.ne.s32.totalorder %s285, %s286
      %p300 = scmp.eq.s32.totalorder %s32, 3
      %p301 = por %p299, %p300
      %p303 = scmp.ne.s32.totalorder %s286, %s302
      %p304 = scmp.eq.s32.totalorder %s32, 0
      %p305 = por %p303, %p304
      %s306 = ssub.s32 %s34, %s41
      %p307 = scmp.eq.s32.totalorder %s306, 0
      %s309 = sadd.s32 %s308, 1
      %s310 = scalar_select %p307, %s308, %s309
      %p313 = pneg %p307
      %p314 = scmp.eq.s32.totalorder %s26, 3
      %p315 = por %p313, %p314
      %p316 = scmp.ne.s32.totalorder %s308, %s311
      %p317 = scmp.eq.s32.totalorder %s26, 0
      %p318 = por %p316, %p317
      %p319 = scmp.ne.s32.totalorder %s308, %s311
      %p320 = scmp.eq.s32.totalorder %s31, 3
      %p321 = por %p319, %p320
      %p322 = scmp.ne.s32.totalorder %s311, %s312
      %p323 = scmp.eq.s32.totalorder %s31, 0
      %p324 = por %p322, %p323
      %p325 = scmp.ne.s32.totalorder %s311, %s312
      %p326 = scmp.eq.s32.totalorder %s32, 3
      %p327 = por %p325, %p326
      %p329 = scmp.ne.s32.totalorder %s312, %s328
      %p330 = scmp.eq.s32.totalorder %s32, 0
      %p331 = por %p329, %p330
      %s332 = ssub.s32 %s34, %s41
      %p333 = scmp.eq.s32.totalorder %s332, 0
      %s335 = sadd.s32 %s334, 1
      %s336 = scalar_select %p333, %s334, %s335
      %p339 = pneg %p333
      %p340 = scmp.eq.s32.totalorder %s26, 3
      %p341 = por %p339, %p340
      %p342 = scmp.ne.s32.totalorder %s334, %s337
      %p343 = scmp.eq.s32.totalorder %s26, 0
      %p344 = por %p342, %p343
      %p345 = scmp.ne.s32.totalorder %s334, %s337
      %p346 = scmp.eq.s32.totalorder %s31, 3
      %p347 = por %p345, %p346
      %p348 = scmp.ne.s32.totalorder %s337, %s338
      %p349 = scmp.eq.s32.totalorder %s31, 0
      %p350 = por %p348, %p349
      %p351 = scmp.ne.s32.totalorder %s337, %s338
      %p352 = scmp.eq.s32.totalorder %s32, 3
      %p353 = por %p351, %p352
      %p355 = scmp.ne.s32.totalorder %s338, %s354
      %p356 = scmp.eq.s32.totalorder %s32, 0
      %p357 = por %p355, %p356
      %s358 = ssub.s32 %s34, %s41
      %p359 = scmp.eq.s32.totalorder %s358, 0
      %s361 = sadd.s32 %s360, 1
      %s362 = scalar_select %p359, %s360, %s361
      %p365 = pneg %p359
      %p366 = scmp.eq.s32.totalorder %s26, 3
      %p367 = por %p365, %p366
      %p368 = scmp.ne.s32.totalorder %s360, %s363
      %p369 = scmp.eq.s32.totalorder %s26, 0
      %p370 = por %p368, %p369
      %p371 = scmp.ne.s32.totalorder %s360, %s363
      %p372 = scmp.eq.s32.totalorder %s31, 3
      %p373 = por %p371, %p372
      %p374 = scmp.ne.s32.totalorder %s363, %s364
      %p375 = scmp.eq.s32.totalorder %s31, 0
      %p376 = por %p374, %p375
      %p377 = scmp.ne.s32.totalorder %s363, %s364
      %p378 = scmp.eq.s32.totalorder %s32, 3
      %p379 = por %p377, %p378
      %p381 = scmp.ne.s32.totalorder %s364, %s380
      %p382 = scmp.eq.s32.totalorder %s32, 0
      %p383 = por %p381, %p382
      %s384 = ssub.s32 %s33, %s45
      %p385 = scmp.eq.s32.totalorder %s384, 0
      %s387 = sadd.s32 %s386, 1
      %s388 = scalar_select %p385, %s386, %s387
      %p391 = pneg %p385
      %p392 = scmp.eq.s32.totalorder %s26, 3
      %p393 = por %p391, %p392
      %p394 = scmp.ne.s32.totalorder %s386, %s389
      %p395 = scmp.eq.s32.totalorder %s26, 0
      %p396 = por %p394, %p395
      %p397 = scmp.ne.s32.totalorder %s386, %s389
      %p398 = scmp.eq.s32.totalorder %s31, 3
      %p399 = por %p397, %p398
      %p400 = scmp.ne.s32.totalorder %s389, %s390
      %p401 = scmp.eq.s32.totalorder %s31, 0
      %p402 = por %p400, %p401
      %p403 = scmp.ne.s32.totalorder %s389, %s390
      %p404 = scmp.eq.s32.totalorder %s32, 3
      %p405 = por %p403, %p404
      %p407 = scmp.ne.s32.totalorder %s390, %s406
      %p408 = scmp.eq.s32.totalorder %s32, 0
      %p409 = por %p407, %p408
      %s410 = ssub.s32 %s33, %s45
      %s411 = ssub.s32 %s34, %s41
      %s412 = sor.u32 %s410, %s411
      %p413 = scmp.eq.s32.totalorder %s412, 0
      %s415 = sadd.s32 %s414, 1
      %s416 = scalar_select %p413, %s414, %s415
      %p419 = pneg %p413
      %p420 = scmp.eq.s32.totalorder %s26, 3
      %p421 = por %p419, %p420
      %p422 = scmp.ne.s32.totalorder %s414, %s417
      %p423 = scmp.eq.s32.totalorder %s26, 0
      %p424 = por %p422, %p423
      %p425 = scmp.ne.s32.totalorder %s414, %s417
      %p426 = scmp.eq.s32.totalorder %s31, 3
      %p427 = por %p425, %p426
      %p428 = scmp.ne.s32.totalorder %s417, %s418
      %p429 = scmp.eq.s32.totalorder %s31, 0
      %p430 = por %p428, %p429
      %p431 = scmp.ne.s32.totalorder %s417, %s418
      %p432 = scmp.eq.s32.totalorder %s32, 3
      %p433 = por %p431, %p432
      %p435 = scmp.ne.s32.totalorder %s418, %s434
      %p436 = scmp.eq.s32.totalorder %s32, 0
      %p437 = por %p435, %p436
      %p438 = scmp.le.s32.totalorder 1, %s26
      %p439 = scmp.lt.s32.totalorder %s26, 5
      %p440 = pnand %p438, %p439
      %p441 = pneg %p440
      // Predicated region
      $region9: #{tpu_custom_call.1} parent=5 // pred_check
        _
      $region10: #{tpu_custom_call.1} parent=5 // pred_check_branch
        %443 = sbr.rel (%p440) target = $region12
      $region11: #{tpu_custom_call.1} parent=5 // pred_region
        %s444 = ssub.s32 %s26, 1
        // Predicated region
        $region13: #{tpu_custom_call.1} parent=11 // pred_check
          %p445 = pneg %p64
        $region14: #{tpu_custom_call.1} parent=11 // pred_check_branch
          %447 = sbr.rel (%p445) target = $region16
        $region15: #{tpu_custom_call.1} parent=11 // pred_region
          %s448 = smul.u32 2, %s35
          %s450 = ssub.s32 256, 256
          %451 = vsyncadd [#allocation4], %s450
          %s452 = smul.addr %s448, 128
          %s453 = scalar_lea.hbm %s0, %s452
          %s454 = sshll.u32 [#allocation3], 4
          %s455 = int_to_ptr.vmem [resolvable:$true] %s454
          %460 = dma.hbm_to_vmem [thread:$0]  %s453, 256, %s455, [#allocation4], 128, 128, 8
        $region16: #{tpu_custom_call.1} parent=11 // pred_fallthru
          _
      $region12: #{tpu_custom_call.1} parent=5 // pred_fallthru
        _
      %p461 = scmp.lt.s32.totalorder %s26, 4
      // Predicated region
      $region17: #{tpu_custom_call.1} parent=5 // pred_check
        %p462 = pneg %p461
      $region18: #{tpu_custom_call.1} parent=5 // pred_check_branch
        %464 = sbr.rel (%p462) target = $region20
      $region19: #{tpu_custom_call.1} parent=5 // pred_region
        // Predicated region
        $region21: #{tpu_custom_call.1} parent=19 // pred_check
          %p465 = pneg %p84
        $region22: #{tpu_custom_call.1} parent=19 // pred_check_branch
          %467 = sbr.rel (%p465) target = $region24
        $region23: #{tpu_custom_call.1} parent=19 // pred_region
          %p468 = scmp.lt.s32.totalorder %s34, 3
          %s469 = scalar_select %p468, %s34, 3
          %s470 = smul.addr %s469, 4
          %s471 = smul.addr %s470, 8
          %s472 = scalar_lea.vmem %s1, %s471
        $region24: #{tpu_custom_call.1} parent=19 // pred_fallthru
          _
        // Predicated region
        $region25: #{tpu_custom_call.1} parent=19 // pred_check
          %p473 = pneg %p110
        $region26: #{tpu_custom_call.1} parent=19 // pred_check_branch
          %475 = sbr.rel (%p473) target = $region28
        $region27: #{tpu_custom_call.1} parent=19 // pred_region
          %p476 = scmp.lt.s32.totalorder %s34, 3
          %s477 = scalar_select %p476, %s34, 3
          %s478 = scalar_lea.vmem %s2, %s477
        $region28: #{tpu_custom_call.1} parent=19 // pred_fallthru
          _
        // Predicated region
        $region29: #{tpu_custom_call.1} parent=19 // pred_check
          %p479 = pneg %p136
        $region30: #{tpu_custom_call.1} parent=19 // pred_check_branch
          %481 = sbr.rel (%p479) target = $region32
        $region31: #{tpu_custom_call.1} parent=19 // pred_region
          %p482 = scmp.lt.s32.totalorder %s34, 3
          %s483 = scalar_select %p482, %s34, 3
          %s484 = smul.addr %s483, 4
          %s485 = smul.addr %s484, 8
          %s486 = scalar_lea.vmem %s3, %s485
        $region32: #{tpu_custom_call.1} parent=19 // pred_fallthru
          _
        // Predicated region
        $region33: #{tpu_custom_call.1} parent=19 // pred_check
          %p487 = pneg %p162
        $region34: #{tpu_custom_call.1} parent=19 // pred_check_branch
          %489 = sbr.rel (%p487) target = $region36
        $region35: #{tpu_custom_call.1} parent=19 // pred_region
          %p490 = scmp.lt.s32.totalorder %s34, 3
          %s491 = scalar_select %p490, %s34, 3
          %s492 = scalar_lea.vmem %s4, %s491
        $region36: #{tpu_custom_call.1} parent=19 // pred_fallthru
          _
        // Predicated region
        $region37: #{tpu_custom_call.1} parent=19 // pred_check
          %p493 = pneg %p188
        $region38: #{tpu_custom_call.1} parent=19 // pred_check_branch
          %495 = sbr.rel (%p493) target = $region40
        $region39: #{tpu_custom_call.1} parent=19 // pred_region
          %p496 = scmp.lt.s32.totalorder %s34, 3
          %s497 = scalar_select %p496, %s34, 3
          %s498 = scalar_lea.vmem %s5, %s497
        $region40: #{tpu_custom_call.1} parent=19 // pred_fallthru
          _
        // Predicated region
        $region41: #{tpu_custom_call.1} parent=19 // pred_check
          %p499 = pneg %p214
        $region42: #{tpu_custom_call.1} parent=19 // pred_check_branch
          %501 = sbr.rel (%p499) target = $region44
        $region43: #{tpu_custom_call.1} parent=19 // pred_region
          %p502 = scmp.lt.s32.totalorder %s34, 3
          %s503 = scalar_select %p502, %s34, 3
          %s504 = scalar_lea.vmem %s6, %s503
        $region44: #{tpu_custom_call.1} parent=19 // pred_fallthru
          _
        // Predicated region
        $region45: #{tpu_custom_call.1} parent=19 // pred_check
          %p505 = pneg %p240
        $region46: #{tpu_custom_call.1} parent=19 // pred_check_branch
          %507 = sbr.rel (%p505) target = $region48
        $region47: #{tpu_custom_call.1} parent=19 // pred_region
          %p508 = scmp.lt.s32.totalorder %s34, 3
          %s509 = scalar_select %p508, %s34, 3
          %s510 = smul.addr %s509, 4
          %s511 = smul.addr %s510, 8
          %s512 = scalar_lea.vmem %s7, %s511
        $region48: #{tpu_custom_call.1} parent=19 // pred_fallthru
          _
        // Predicated region
        $region49: #{tpu_custom_call.1} parent=19 // pred_check
          %p513 = pneg %p266
        $region50: #{tpu_custom_call.1} parent=19 // pred_check_branch
          %515 = sbr.rel (%p513) target = $region52
        $region51: #{tpu_custom_call.1} parent=19 // pred_region
          %p516 = scmp.lt.s32.totalorder %s34, 3
          %s517 = scalar_select %p516, %s34, 3
          %s518 = scalar_lea.vmem %s8, %s517
        $region52: #{tpu_custom_call.1} parent=19 // pred_fallthru
          _
        // Predicated region
        $region53: #{tpu_custom_call.1} parent=19 // pred_check
          %p519 = pneg %p292
        $region54: #{tpu_custom_call.1} parent=19 // pred_check_branch
          %521 = sbr.rel (%p519) target = $region56
        $region55: #{tpu_custom_call.1} parent=19 // pred_region
          %p522 = scmp.lt.s32.totalorder %s34, 3
          %s523 = scalar_select %p522, %s34, 3
          %s524 = smul.addr %s523, 8
          %s525 = smul.addr %s524, 8
          %s526 = scalar_lea.vmem %s9, %s525
        $region56: #{tpu_custom_call.1} parent=19 // pred_fallthru
          _
        // Predicated region
        $region57: #{tpu_custom_call.1} parent=19 // pred_check
          %p527 = pneg %p318
        $region58: #{tpu_custom_call.1} parent=19 // pred_check_branch
          %529 = sbr.rel (%p527) target = $region60
        $region59: #{tpu_custom_call.1} parent=19 // pred_region
          %p530 = scmp.lt.s32.totalorder %s34, 3
          %s531 = scalar_select %p530, %s34, 3
          %s532 = scalar_lea.vmem %s10, %s531
        $region60: #{tpu_custom_call.1} parent=19 // pred_fallthru
          _
        // Predicated region
        $region61: #{tpu_custom_call.1} parent=19 // pred_check
          %p533 = pneg %p344
        $region62: #{tpu_custom_call.1} parent=19 // pred_check_branch
          %535 = sbr.rel (%p533) target = $region64
        $region63: #{tpu_custom_call.1} parent=19 // pred_region
          %p536 = scmp.lt.s32.totalorder %s34, 3
          %s537 = scalar_select %p536, %s34, 3
          %s538 = scalar_lea.vmem %s11, %s537
        $region64: #{tpu_custom_call.1} parent=19 // pred_fallthru
          _
        // Predicated region
        $region65: #{tpu_custom_call.1} parent=19 // pred_check
          %p539 = pneg %p370
        $region66: #{tpu_custom_call.1} parent=19 // pred_check_branch
          %541 = sbr.rel (%p539) target = $region68
        $region67: #{tpu_custom_call.1} parent=19 // pred_region
          %p542 = scmp.lt.s32.totalorder %s34, 3
          %s543 = scalar_select %p542, %s34, 3
          %s544 = scalar_lea.vmem %s12, %s543
        $region68: #{tpu_custom_call.1} parent=19 // pred_fallthru
          _
      $region20: #{tpu_custom_call.1} parent=5 // pred_fallthru
        _
      %p545 = scmp.le.s32.totalorder 1, %s26
      %p546 = scmp.lt.s32.totalorder %s26, 5
      %p547 = pnand %p545, %p546
      %p548 = pneg %p547
      // Predicated region
      $region69: #{tpu_custom_call.1} parent=5 // pred_check
        _
      $region70: #{tpu_custom_call.1} parent=5 // pred_check_branch
        %550 = sbr.rel (%p547) target = $region72
      $region71: #{tpu_custom_call.1} parent=5 // pred_region
        %s551 = ssub.s32 %s26, 1
        // Predicated region
        $region73: #{tpu_custom_call.1} parent=71 // pred_check
          %p552 = pneg %p64
        $region74: #{tpu_custom_call.1} parent=71 // pred_check_branch
          %554 = sbr.rel (%p552) target = $region76
        $region75: #{tpu_custom_call.1} parent=71 // pred_region
          %555 = dma.done [#allocation4], 256
        $region76: #{tpu_custom_call.1} parent=71 // pred_fallthru
          _
        %p556 = pneg %p64
        %p557 = pneg %p61
        %p558 = scmp.lt.s32.totalorder %s36, 3
        %s559 = scalar_select %p558, %s36, 3
        %s560 = smul.addr %s559, 4
        %s561 = smul.addr %s560, 8
        %s562 = scalar_lea.vmem %s1, %s561
        %p563 = pneg %p90
        %p564 = pneg %p87
        %p565 = scmp.lt.s32.totalorder %s36, 3
        %s566 = scalar_select %p565, %s36, 3
        %s567 = scalar_lea.vmem %s2, %s566
        %p568 = pneg %p116
        %p569 = pneg %p113
        %p570 = scmp.lt.s32.totalorder %s36, 3
        %s571 = scalar_select %p570, %s36, 3
        %s572 = smul.addr %s571, 4
        %s573 = smul.addr %s572, 8
        %s574 = scalar_lea.vmem %s3, %s573
        %p575 = pneg %p142
        %p576 = pneg %p139
        %p577 = scmp.lt.s32.totalorder %s36, 3
        %s578 = scalar_select %p577, %s36, 3
        %s579 = scalar_lea.vmem %s4, %s578
        %p580 = pneg %p168
        %p581 = pneg %p165
        %p582 = scmp.lt.s32.totalorder %s36, 3
        %s583 = scalar_select %p582, %s36, 3
        %s584 = scalar_lea.vmem %s5, %s583
        %p585 = pneg %p194
        %p586 = pneg %p191
        %p587 = scmp.lt.s32.totalorder %s36, 3
        %s588 = scalar_select %p587, %s36, 3
        %s589 = scalar_lea.vmem %s6, %s588
        %p590 = pneg %p220
        %p591 = pneg %p217
        %p592 = scmp.lt.s32.totalorder %s36, 3
        %s593 = scalar_select %p592, %s36, 3
        %s594 = smul.addr %s593, 4
        %s595 = smul.addr %s594, 8
        %s596 = scalar_lea.vmem %s7, %s595
        %p597 = pneg %p246
        %p598 = pneg %p243
        %p599 = scmp.lt.s32.totalorder %s36, 3
        %s600 = scalar_select %p599, %s36, 3
        %s601 = scalar_lea.vmem %s8, %s600
        %p602 = pneg %p272
        %p603 = pneg %p269
        %p604 = scmp.lt.s32.totalorder %s36, 3
        %s605 = scalar_select %p604, %s36, 3
        %s606 = smul.addr %s605, 8
        %s607 = smul.addr %s606, 8
        %s608 = scalar_lea.vmem %s9, %s607
        %p609 = pneg %p298
        %p610 = pneg %p295
        %p611 = scmp.lt.s32.totalorder %s36, 3
        %s612 = scalar_select %p611, %s36, 3
        %s613 = scalar_lea.vmem %s10, %s612
        %p614 = pneg %p324
        %p615 = pneg %p321
        %p616 = scmp.lt.s32.totalorder %s36, 3
        %s617 = scalar_select %p616, %s36, 3
        %s618 = scalar_lea.vmem %s11, %s617
        %p619 = pneg %p350
        %p620 = pneg %p347
        %p621 = scmp.lt.s32.totalorder %s36, 3
        %s622 = scalar_select %p621, %s36, 3
        %s623 = scalar_lea.vmem %s12, %s622
        %p624 = pneg %p376
        %p625 = pneg %p373
        %p626 = pneg %p402
        %p627 = pneg %p399
        %p628 = pneg %p430
        %p629 = pneg %p427
        %s630 = sand.u32 %s417, 1
        %s631 = scalar_lea.sflag [#allocation8], %s630
        %s632 = sand.u32 %s417, 1
        %s633 = smul.addr %s632, 32
        %s634 = scalar_lea.vmem [#allocation7], %s633
        %s635 = smul.u32 2, %s35
        %p636 = scmp.lt.s32.totalorder %s36, 3
        %s637 = scalar_select %p636, %s36, 3
        %s638 = smul.addr %s637, 4
        %s639 = smul.addr %s638, 8
        %s640 = scalar_lea.vmem %s1, %s639
        %p641 = scmp.lt.s32.totalorder %s36, 3
        %s642 = scalar_select %p641, %s36, 3
        %s643 = scalar_lea.vmem %s2, %s642
        %p644 = scmp.lt.s32.totalorder %s36, 3
        %s645 = scalar_select %p644, %s36, 3
        %s646 = smul.addr %s645, 4
        %s647 = smul.addr %s646, 8
        %s648 = scalar_lea.vmem %s3, %s647
        %p649 = scmp.lt.s32.totalorder %s36, 3
        %s650 = scalar_select %p649, %s36, 3
        %s651 = scalar_lea.vmem %s4, %s650
        %p652 = scmp.lt.s32.totalorder %s36, 3
        %s653 = scalar_select %p652, %s36, 3
        %s654 = scalar_lea.vmem %s5, %s653
        %p655 = scmp.lt.s32.totalorder %s36, 3
        %s656 = scalar_select %p655, %s36, 3
        %s657 = scalar_lea.vmem %s6, %s656
        %p658 = scmp.lt.s32.totalorder %s36, 3
        %s659 = scalar_select %p658, %s36, 3
        %s660 = smul.addr %s659, 4
        %s661 = smul.addr %s660, 8
        %s662 = scalar_lea.vmem %s7, %s661
        %p663 = scmp.lt.s32.totalorder %s36, 3
        %s664 = scalar_select %p663, %s36, 3
        %s665 = scalar_lea.vmem %s8, %s664
        %p666 = scmp.lt.s32.totalorder %s36, 3
        %s667 = scalar_select %p666, %s36, 3
        %s668 = smul.addr %s667, 8
        %s669 = smul.addr %s668, 8
        %s670 = scalar_lea.vmem %s9, %s669
        %p671 = scmp.lt.s32.totalorder %s36, 3
        %s672 = scalar_select %p671, %s36, 3
        %s673 = scalar_lea.vmem %s10, %s672
        %p674 = scmp.lt.s32.totalorder %s36, 3
        %s675 = scalar_select %p674, %s36, 3
        %s676 = scalar_lea.vmem %s11, %s675
        %p677 = scmp.lt.s32.totalorder %s36, 3
        %s678 = scalar_select %p677, %s36, 3
        %s679 = scalar_lea.vmem %s12, %s678
        %s680 = smul.u32 2, %s35
        %s681 = smul.u32 2, %s35
        %p682 = scmp.eq.s32.totalorder %s36, 0
        // Predicated region
        $region77: #{tpu_custom_call.1} parent=71 // pred_check
          %p683 = pneg %p682
        $region78: #{tpu_custom_call.1} parent=71 // pred_check_branch
          %685 = sbr.rel (%p683) target = $region80
        $region79: #{tpu_custom_call.1} parent=71 // pred_region
          %v686 = vld [vmem:[#allocation3] sm:$0xff]
          %v687 = vld [vmem:[#allocation3 + $0x8] sm:$0xff]
          %vm688 = vcmask 261120
          %689 = vst.msk [vmem:[#allocation2] sm:$0xff] %vm688, %v686
          %690 = vst.msk [vmem:[#allocation2 + $0x8] sm:$0xff] %vm688, %v687
        $region80: #{tpu_custom_call.1} parent=71 // pred_fallthru
          _
        %v691 = vld [vmem:[#allocation2] sm:$0xff]
        %v692 = vld [vmem:[#allocation2 + $0x8] sm:$0xff]
        %v693 = vld [vmem:[%s640] sm:$0xff]
        %v694 = vld [vmem:[%s640 + $0x8] sm:$0xff]
        %v695 = vld [vmem:[%s640 + $0x10] sm:$0xff]
        %v696 = vld [vmem:[%s640 + $0x18] sm:$0xff]
        %v697 = vld [vmem:[%s643] sm:$0x1]
        %v699 = vlaneseq
        %v700 = vshrl.u32 %v699, 7
        %v701 = vsub.s32 0, %v700
        %v702 = vrot.slane %v697, %v701
        %vm704 = vcmask 261120
        %v706 = vsel %vm704, %v691, 0
        %v709 = vsel %vm704, %v692, 0
        %711 = vmatprep.subr.mxu0 0.0
        %712 = vmatpush1.msra.mxu0 %v693
        %713 = vmatprep.subr.mxu0 0.0
        %714 = vmatpush1.msra.mxu0 %v694
        %715 = vmatprep.subr.mxu0 0.0
        %716 = vmatpush1.msra.mxu0 %v695
        %717 = vmatprep.subr.mxu0 0.0
        %718 = vmatpush1.msra.mxu0 %v696
        %719 = vmatprep.subr.mxu0 0.0
        %720 = vmatpush1.msra.mxu0 0.0
        %721 = vmatprep.subr.mxu0 0.0
        %722 = vmatpush1.msra.mxu0 0.0
        %723 = vmatprep.subr.mxu0 0.0
        %724 = vmatpush1.msra.mxu0 0.0
        %725 = vmatprep.subr.mxu0 0.0
        %726 = vmatpush1.msra.mxu0 0.0
        %727 = vmatprep.subr.mxu0 0.0
        %728 = vmatpush1.msra.mxu0 0.0
        %729 = vmatprep.subr.mxu0 0.0
        %730 = vmatpush1.msra.mxu0 0.0
        %731 = vmatprep.subr.mxu0 0.0
        %732 = vmatpush1.msra.mxu0 0.0
        %733 = vmatprep.subr.mxu0 0.0
        %734 = vmatpush1.msra.mxu0 0.0
        %735 = vmatprep.subr.mxu0 0.0
        %736 = vmatpush1.msra.mxu0 0.0
        %737 = vmatprep.subr.mxu0 0.0
        %738 = vmatpush1.msra.mxu0 0.0
        %739 = vmatprep.subr.mxu0 0.0
        %740 = vmatpush1.msra.mxu0 0.0
        %741 = vmatprep.subr.mxu0 0.0
        %742 = vmatpush1.msra.mxu0 0.0
        %743 = vmatprep.subr.mxu0 0.0
        %744 = vmatpush1.msra.mxu0 0.0
        %745 = vmatprep.subr.mxu0 0.0
        %746 = vmatpush1.msra.mxu0 0.0
        %747 = vmatprep.subr.mxu0 0.0
        %748 = vmatpush1.msra.mxu0 0.0
        %749 = vmatprep.subr.mxu0 0.0
        %750 = vmatpush1.msra.mxu0 0.0
        %751 = vmatprep.subr.mxu0 0.0
        %752 = vmatpush1.msra.mxu0 0.0
        %753 = vmatprep.subr.mxu0 0.0
        %754 = vmatpush1.msra.mxu0 0.0
        %755 = vmatprep.subr.mxu0 0.0
        %756 = vmatpush1.msra.mxu0 0.0
        %757 = vmatprep.subr.mxu0 0.0
        %758 = vmatpush1.msra.mxu0 0.0
        %759 = vmatprep.subr.mxu0 0.0
        %760 = vmatpush1.msra.mxu0 0.0
        %761 = vmatprep.subr.mxu0 0.0
        %762 = vmatpush1.msra.mxu0 0.0
        %763 = vmatprep.subr.mxu0 0.0
        %764 = vmatpush1.msra.mxu0 0.0
        %765 = vmatprep.subr.mxu0 0.0
        %766 = vmatpush1.msra.mxu0 0.0
        %767 = vmatprep.subr.mxu0 0.0
        %768 = vmatpush1.msra.mxu0 0.0
        %769 = vmatprep.subr.mxu0 0.0
        %770 = vmatpush1.msra.mxu0 0.0
        %771 = vmatprep.subr.mxu0 0.0
        %772 = vmatpush1.msra.mxu0 0.0
        %773 = vmatprep.subr.mxu0 0.0
        %774 = vmatpush1.msra.mxu0 0.0
        %775 = vmatprep.mubr.f32.mxu0 0.0
        %776 = vmatmul.mubr.f32.gmra.mrb[0].mxu0 %v706
        %v777 = vpop.f32.mrb[0].mxu0
        %v778 = vadd.f32 %v702, %v777
        %v779 = vpop.f32.mrb[0].mxu0
        %780 = vmatprep.mubr.f32.mxu0 0.0
        %781 = vmatmul.mubr.f32.gmra.mrb[0].mxu0 %v709
        %v782 = vpop.f32.mrb[0].mxu0
        %v783 = vadd.f32 %v702, %v782
        %v784 = vpop.f32.mrb[0].mxu0
        %785 = vdwg.mxu0
        %787 = vrot.lane.b32.xlu0 %v778, 96
        %v788 = vpop.permute.xlu0 %787
        %vm789 = vcmask 130048
        %v790 = vsel %vm789, %v778, 0
        %v792 = vsel %vm789, %v788, 0
        %794 = vmatprep.subr.mxu0 0.0
        %795 = vmatpush1.xpose.msra.mxu0 %v792
        %796 = vmatprep.subr.mxu0 0.0
        %797 = vmatpush1.xpose.msra.mxu0 0.0
        %798 = vmatprep.subr.mxu0 0.0
        %799 = vmatpush1.xpose.msra.mxu0 0.0
        %800 = vmatprep.subr.mxu0 0.0
        %801 = vmatpush1.xpose.msra.mxu0 0.0
        %802 = vmatprep.subr.mxu0 0.0
        %803 = vmatpush1.xpose.msra.mxu0 0.0
        %804 = vmatprep.subr.mxu0 0.0
        %805 = vmatpush1.xpose.msra.mxu0 0.0
        %806 = vmatprep.subr.mxu0 0.0
        %807 = vmatpush1.xpose.msra.mxu0 0.0
        %808 = vmatprep.subr.mxu0 0.0
        %809 = vmatpush1.xpose.msra.mxu0 0.0
        %810 = vmatprep.subr.mxu0 0.0
        %811 = vmatpush1.xpose.msra.mxu0 0.0
        %812 = vmatprep.subr.mxu0 0.0
        %813 = vmatpush1.xpose.msra.mxu0 0.0
        %814 = vmatprep.subr.mxu0 0.0
        %815 = vmatpush1.xpose.msra.mxu0 0.0
        %816 = vmatprep.subr.mxu0 0.0
        %817 = vmatpush1.xpose.msra.mxu0 0.0
        %818 = vmatprep.subr.mxu0 0.0
        %819 = vmatpush1.xpose.msra.mxu0 0.0
        %820 = vmatprep.subr.mxu0 0.0
        %821 = vmatpush1.xpose.msra.mxu0 0.0
        %822 = vmatprep.subr.mxu0 0.0
        %823 = vmatpush1.xpose.msra.mxu0 0.0
        %824 = vmatprep.subr.mxu0 0.0
        %825 = vmatpush1.xpose.msra.mxu0 0.0
        %826 = vmatprep.subr.mxu0 0.0
        %827 = vmatpush1.xpose.msra.mxu0 0.0
        %828 = vmatprep.subr.mxu0 0.0
        %829 = vmatpush1.xpose.msra.mxu0 0.0
        %830 = vmatprep.subr.mxu0 0.0
        %831 = vmatpush1.xpose.msra.mxu0 0.0
        %832 = vmatprep.subr.mxu0 0.0
        %833 = vmatpush1.xpose.msra.mxu0 0.0
        %834 = vmatprep.subr.mxu0 0.0
        %835 = vmatpush1.xpose.msra.mxu0 0.0
        %836 = vmatprep.subr.mxu0 0.0
        %837 = vmatpush1.xpose.msra.mxu0 0.0
        %838 = vmatprep.subr.mxu0 0.0
        %839 = vmatpush1.xpose.msra.mxu0 0.0
        %840 = vmatprep.subr.mxu0 0.0
        %841 = vmatpush1.xpose.msra.mxu0 0.0
        %842 = vmatprep.subr.mxu0 0.0
        %843 = vmatpush1.xpose.msra.mxu0 0.0
        %844 = vmatprep.subr.mxu0 0.0
        %845 = vmatpush1.xpose.msra.mxu0 0.0
        %846 = vmatprep.subr.mxu0 0.0
        %847 = vmatpush1.xpose.msra.mxu0 0.0
        %848 = vmatprep.subr.mxu0 0.0
        %849 = vmatpush1.xpose.msra.mxu0 0.0
        %850 = vmatprep.subr.mxu0 0.0
        %851 = vmatpush1.xpose.msra.mxu0 0.0
        %852 = vmatprep.subr.mxu0 0.0
        %853 = vmatpush1.xpose.msra.mxu0 0.0
        %854 = vmatprep.subr.mxu0 0.0
        %855 = vmatpush1.xpose.msra.mxu0 0.0
        %856 = vmatprep.subr.mxu0 0.0
        %857 = vmatpush1.xpose.msra.mxu0 0.0
        %858 = vmatprep.mubr.f32.mxu0 0.0
        %859 = vmatmul.mubr.f32.gmra.mrb[0].mxu0 %v790
        %v860 = vpop.f32.mrb[0].mxu0
        %v861 = vadd.f32 0.0, %v860
        %v862 = vpop.f32.mrb[0].mxu0
        %863 = vdwg.mxu0
        %865 = vrot.lane.b32.xlu0 %v783, 96
        %v866 = vpop.permute.xlu0 %865
        %v867 = vsel %vm789, %v783, 0
        %v869 = vsel %vm789, %v866, 0
        %871 = vmatprep.subr.mxu0 0.0
        %872 = vmatpush1.xpose.msra.mxu0 %v869
        %873 = vmatprep.subr.mxu0 0.0
        %874 = vmatpush1.xpose.msra.mxu0 0.0
        %875 = vmatprep.subr.mxu0 0.0
        %876 = vmatpush1.xpose.msra.mxu0 0.0
        %877 = vmatprep.subr.mxu0 0.0
        %878 = vmatpush1.xpose.msra.mxu0 0.0
        %879 = vmatprep.subr.mxu0 0.0
        %880 = vmatpush1.xpose.msra.mxu0 0.0
        %881 = vmatprep.subr.mxu0 0.0
        %882 = vmatpush1.xpose.msra.mxu0 0.0
        %883 = vmatprep.subr.mxu0 0.0
        %884 = vmatpush1.xpose.msra.mxu0 0.0
        %885 = vmatprep.subr.mxu0 0.0
        %886 = vmatpush1.xpose.msra.mxu0 0.0
        %887 = vmatprep.subr.mxu0 0.0
        %888 = vmatpush1.xpose.msra.mxu0 0.0
        %889 = vmatprep.subr.mxu0 0.0
        %890 = vmatpush1.xpose.msra.mxu0 0.0
        %891 = vmatprep.subr.mxu0 0.0
        %892 = vmatpush1.xpose.msra.mxu0 0.0
        %893 = vmatprep.subr.mxu0 0.0
        %894 = vmatpush1.xpose.msra.mxu0 0.0
        %895 = vmatprep.subr.mxu0 0.0
        %896 = vmatpush1.xpose.msra.mxu0 0.0
        %897 = vmatprep.subr.mxu0 0.0
        %898 = vmatpush1.xpose.msra.mxu0 0.0
        %899 = vmatprep.subr.mxu0 0.0
        %900 = vmatpush1.xpose.msra.mxu0 0.0
        %901 = vmatprep.subr.mxu0 0.0
        %902 = vmatpush1.xpose.msra.mxu0 0.0
        %903 = vmatprep.subr.mxu0 0.0
        %904 = vmatpush1.xpose.msra.mxu0 0.0
        %905 = vmatprep.subr.mxu0 0.0
        %906 = vmatpush1.xpose.msra.mxu0 0.0
        %907 = vmatprep.subr.mxu0 0.0
        %908 = vmatpush1.xpose.msra.mxu0 0.0
        %909 = vmatprep.subr.mxu0 0.0
        %910 = vmatpush1.xpose.msra.mxu0 0.0
        %911 = vmatprep.subr.mxu0 0.0
        %912 = vmatpush1.xpose.msra.mxu0 0.0
        %913 = vmatprep.subr.mxu0 0.0
        %914 = vmatpush1.xpose.msra.mxu0 0.0
        %915 = vmatprep.subr.mxu0 0.0
        %916 = vmatpush1.xpose.msra.mxu0 0.0
        %917 = vmatprep.subr.mxu0 0.0
        %918 = vmatpush1.xpose.msra.mxu0 0.0
        %919 = vmatprep.subr.mxu0 0.0
        %920 = vmatpush1.xpose.msra.mxu0 0.0
        %921 = vmatprep.subr.mxu0 0.0
        %922 = vmatpush1.xpose.msra.mxu0 0.0
        %923 = vmatprep.subr.mxu0 0.0
        %924 = vmatpush1.xpose.msra.mxu0 0.0
        %925 = vmatprep.subr.mxu0 0.0
        %926 = vmatpush1.xpose.msra.mxu0 0.0
        %927 = vmatprep.subr.mxu0 0.0
        %928 = vmatpush1.xpose.msra.mxu0 0.0
        %929 = vmatprep.subr.mxu0 0.0
        %930 = vmatpush1.xpose.msra.mxu0 0.0
        %931 = vmatprep.subr.mxu0 0.0
        %932 = vmatpush1.xpose.msra.mxu0 0.0
        %933 = vmatprep.subr.mxu0 0.0
        %934 = vmatpush1.xpose.msra.mxu0 0.0
        %935 = vmatprep.mubr.f32.mxu0 0.0
        %936 = vmatmul.mubr.f32.gmra.mrb[0].mxu0 %v867
        %v937 = vpop.f32.mrb[0].mxu0
        %v938 = vadd.f32 0.0, %v937
        %v939 = vpop.f32.mrb[0].mxu0
        %940 = vdwg.mxu0
        %vm941 = vcmask 64512
        %v942 = vsel %vm941, %v861, -inf
        %943 = vmax.xlane.f32.xlu0 %v942
        %v944 = vpop.xlane.xlu0 %943
        %v945 = vsel %vm941, %v938, -inf
        %946 = vmax.xlane.f32.xlu0 %v945
        %v947 = vpop.xlane.xlu0 %946
        %v948 = vsub.f32 %v861, %v944
        %v949 = vsub.f32 %v938, %v947
        %v950 = vmul.f32 %v948, 1.442695
        %v951 = vpow.pop %v950
        %v952 = vmul.f32 %v949, 1.442695
        %v953 = vpow.pop %v952
        %v954 = vsel %vm941, %v951, 0.0
        %955 = vadd.xlane.f32.xlu0 %v954
        %v956 = vpop.xlane.xlu0 %955
        %v957 = vsel %vm941, %v953, 0.0
        %958 = vadd.xlane.f32.xlu0 %v957
        %v959 = vpop.xlane.xlu0 %958
        %v960 = vrcp.pop %v956
        %v961 = vmul.f32 %v951, %v960
        %v962 = vrcp.pop %v959
        %v963 = vmul.f32 %v953, %v962
        %964 = vst.msk [vmem:[%s634] sm:$0xff] %vm941, %v961
        %965 = vst.msk [vmem:[%s634 + $0x10] sm:$0xff] %vm941, %v963
        %966 = vrot.lane.b32.xlu0 %v778, 64
        %v967 = vpop.permute.xlu0 %966
        %v970 = vsel %vm941, %v961, 0
        %972 = vmatprep.subr.mxu0 0.0
        %973 = vmatpush1.msra.mxu0 %v967
        %974 = vmatprep.subr.mxu0 0.0
        %975 = vmatpush1.msra.mxu0 0.0
        %976 = vmatprep.subr.mxu0 0.0
        %977 = vmatpush1.msra.mxu0 0.0
        %978 = vmatprep.subr.mxu0 0.0
        %979 = vmatpush1.msra.mxu0 0.0
        %980 = vmatprep.subr.mxu0 0.0
        %981 = vmatpush1.msra.mxu0 0.0
        %982 = vmatprep.subr.mxu0 0.0
        %983 = vmatpush1.msra.mxu0 0.0
        %984 = vmatprep.subr.mxu0 0.0
        %985 = vmatpush1.msra.mxu0 0.0
        %986 = vmatprep.subr.mxu0 0.0
        %987 = vmatpush1.msra.mxu0 0.0
        %988 = vmatprep.subr.mxu0 0.0
        %989 = vmatpush1.msra.mxu0 0.0
        %990 = vmatprep.subr.mxu0 0.0
        %991 = vmatpush1.msra.mxu0 0.0
        %992 = vmatprep.subr.mxu0 0.0
        %993 = vmatpush1.msra.mxu0 0.0
        %994 = vmatprep.subr.mxu0 0.0
        %995 = vmatpush1.msra.mxu0 0.0
        %996 = vmatprep.subr.mxu0 0.0
        %997 = vmatpush1.msra.mxu0 0.0
        %998 = vmatprep.subr.mxu0 0.0
        %999 = vmatpush1.msra.mxu0 0.0
        %1000 = vmatprep.subr.mxu0 0.0
        %1001 = vmatpush1.msra.mxu0 0.0
        %1002 = vmatprep.subr.mxu0 0.0
        %1003 = vmatpush1.msra.mxu0 0.0
        %1004 = vmatprep.subr.mxu0 0.0
        %1005 = vmatpush1.msra.mxu0 0.0
        %1006 = vmatprep.subr.mxu0 0.0
        %1007 = vmatpush1.msra.mxu0 0.0
        %1008 = vmatprep.subr.mxu0 0.0
        %1009 = vmatpush1.msra.mxu0 0.0
        %1010 = vmatprep.subr.mxu0 0.0
        %1011 = vmatpush1.msra.mxu0 0.0
        %1012 = vmatprep.subr.mxu0 0.0
        %1013 = vmatpush1.msra.mxu0 0.0
        %1014 = vmatprep.subr.mxu0 0.0
        %1015 = vmatpush1.msra.mxu0 0.0
        %1016 = vmatprep.subr.mxu0 0.0
        %1017 = vmatpush1.msra.mxu0 0.0
        %1018 = vmatprep.subr.mxu0 0.0
        %1019 = vmatpush1.msra.mxu0 0.0
        %1020 = vmatprep.subr.mxu0 0.0
        %1021 = vmatpush1.msra.mxu0 0.0
        %1022 = vmatprep.subr.mxu0 0.0
        %1023 = vmatpush1.msra.mxu0 0.0
        %1024 = vmatprep.subr.mxu0 0.0
        %1025 = vmatpush1.msra.mxu0 0.0
        %1026 = vmatprep.subr.mxu0 0.0
        %1027 = vmatpush1.msra.mxu0 0.0
        %1028 = vmatprep.subr.mxu0 0.0
        %1029 = vmatpush1.msra.mxu0 0.0
        %1030 = vmatprep.subr.mxu0 0.0
        %1031 = vmatpush1.msra.mxu0 0.0
        %1032 = vmatprep.subr.mxu0 0.0
        %1033 = vmatpush1.msra.mxu0 0.0
        %1034 = vmatprep.subr.mxu0 0.0
        %1035 = vmatpush1.msra.mxu0 0.0
        %1036 = vmatprep.mubr.f32.mxu0 0.0
        %1037 = vmatmul.mubr.f32.gmra.mrb[0].mxu0 %v970
        %v1038 = vpop.f32.mrb[0].mxu0
        %v1039 = vadd.f32 0.0, %v1038
        %v1040 = vpop.f32.mrb[0].mxu0
        %1041 = vdwg.mxu0
        %1042 = vrot.lane.b32.xlu0 %v783, 64
        %v1043 = vpop.permute.xlu0 %1042
        %v1046 = vsel %vm941, %v963, 0
        %1048 = vmatprep.subr.mxu0 0.0
        %1049 = vmatpush1.msra.mxu0 %v1043
        %1050 = vmatprep.subr.mxu0 0.0
        %1051 = vmatpush1.msra.mxu0 0.0
        %1052 = vmatprep.subr.mxu0 0.0
        %1053 = vmatpush1.msra.mxu0 0.0
        %1054 = vmatprep.subr.mxu0 0.0
        %1055 = vmatpush1.msra.mxu0 0.0
        %1056 = vmatprep.subr.mxu0 0.0
        %1057 = vmatpush1.msra.mxu0 0.0
        %1058 = vmatprep.subr.mxu0 0.0
        %1059 = vmatpush1.msra.mxu0 0.0
        %1060 = vmatprep.subr.mxu0 0.0
        %1061 = vmatpush1.msra.mxu0 0.0
        %1062 = vmatprep.subr.mxu0 0.0
        %1063 = vmatpush1.msra.mxu0 0.0
        %1064 = vmatprep.subr.mxu0 0.0
        %1065 = vmatpush1.msra.mxu0 0.0
        %1066 = vmatprep.subr.mxu0 0.0
        %1067 = vmatpush1.msra.mxu0 0.0
        %1068 = vmatprep.subr.mxu0 0.0
        %1069 = vmatpush1.msra.mxu0 0.0
        %1070 = vmatprep.subr.mxu0 0.0
        %1071 = vmatpush1.msra.mxu0 0.0
        %1072 = vmatprep.subr.mxu0 0.0
        %1073 = vmatpush1.msra.mxu0 0.0
        %1074 = vmatprep.subr.mxu0 0.0
        %1075 = vmatpush1.msra.mxu0 0.0
        %1076 = vmatprep.subr.mxu0 0.0
        %1077 = vmatpush1.msra.mxu0 0.0
        %1078 = vmatprep.subr.mxu0 0.0
        %1079 = vmatpush1.msra.mxu0 0.0
        %1080 = vmatprep.subr.mxu0 0.0
        %1081 = vmatpush1.msra.mxu0 0.0
        %1082 = vmatprep.subr.mxu0 0.0
        %1083 = vmatpush1.msra.mxu0 0.0
        %1084 = vmatprep.subr.mxu0 0.0
        %1085 = vmatpush1.msra.mxu0 0.0
        %1086 = vmatprep.subr.mxu0 0.0
        %1087 = vmatpush1.msra.mxu0 0.0
        %1088 = vmatprep.subr.mxu0 0.0
        %1089 = vmatpush1.msra.mxu0 0.0
        %1090 = vmatprep.subr.mxu0 0.0
        %1091 = vmatpush1.msra.mxu0 0.0
        %1092 = vmatprep.subr.mxu0 0.0
        %1093 = vmatpush1.msra.mxu0 0.0
        %1094 = vmatprep.subr.mxu0 0.0
        %1095 = vmatpush1.msra.mxu0 0.0
        %1096 = vmatprep.subr.mxu0 0.0
        %1097 = vmatpush1.msra.mxu0 0.0
        %1098 = vmatprep.subr.mxu0 0.0
        %1099 = vmatpush1.msra.mxu0 0.0
        %1100 = vmatprep.subr.mxu0 0.0
        %1101 = vmatpush1.msra.mxu0 0.0
        %1102 = vmatprep.subr.mxu0 0.0
        %1103 = vmatpush1.msra.mxu0 0.0
        %1104 = vmatprep.subr.mxu0 0.0
        %1105 = vmatpush1.msra.mxu0 0.0
        %1106 = vmatprep.subr.mxu0 0.0
        %1107 = vmatpush1.msra.mxu0 0.0
        %1108 = vmatprep.subr.mxu0 0.0
        %1109 = vmatpush1.msra.mxu0 0.0
        %1110 = vmatprep.subr.mxu0 0.0
        %1111 = vmatpush1.msra.mxu0 0.0
        %1112 = vmatprep.mubr.f32.mxu0 0.0
        %1113 = vmatmul.mubr.f32.gmra.mrb[0].mxu0 %v1046
        %v1114 = vpop.f32.mrb[0].mxu0
        %v1115 = vadd.f32 0.0, %v1114
        %v1116 = vpop.f32.mrb[0].mxu0
        %1117 = vdwg.mxu0
        %1118 = vrot.lane.b32.xlu0 %v778, 112
        %v1119 = vpop.permute.xlu0 %1118
        %1120 = vrot.lane.b32.xlu0 %v778, 80
        %v1121 = vpop.permute.xlu0 %1120
        %v1122 = vsel %vm789, %v1119, 0
        %v1124 = vsel %vm789, %v1121, 0
        %1126 = vmatprep.subr.mxu0 0.0
        %1127 = vmatpush1.xpose.msra.mxu0 %v1124
        %1128 = vmatprep.subr.mxu0 0.0
        %1129 = vmatpush1.xpose.msra.mxu0 0.0
        %1130 = vmatprep.subr.mxu0 0.0
        %1131 = vmatpush1.xpose.msra.mxu0 0.0
        %1132 = vmatprep.subr.mxu0 0.0
        %1133 = vmatpush1.xpose.msra.mxu0 0.0
        %1134 = vmatprep.subr.mxu0 0.0
        %1135 = vmatpush1.xpose.msra.mxu0 0.0
        %1136 = vmatprep.subr.mxu0 0.0
        %1137 = vmatpush1.xpose.msra.mxu0 0.0
        %1138 = vmatprep.subr.mxu0 0.0
        %1139 = vmatpush1.xpose.msra.mxu0 0.0
        %1140 = vmatprep.subr.mxu0 0.0
        %1141 = vmatpush1.xpose.msra.mxu0 0.0
        %1142 = vmatprep.subr.mxu0 0.0
        %1143 = vmatpush1.xpose.msra.mxu0 0.0
        %1144 = vmatprep.subr.mxu0 0.0
        %1145 = vmatpush1.xpose.msra.mxu0 0.0
        %1146 = vmatprep.subr.mxu0 0.0
        %1147 = vmatpush1.xpose.msra.mxu0 0.0
        %1148 = vmatprep.subr.mxu0 0.0
        %1149 = vmatpush1.xpose.msra.mxu0 0.0
        %1150 = vmatprep.subr.mxu0 0.0
        %1151 = vmatpush1.xpose.msra.mxu0 0.0
        %1152 = vmatprep.subr.mxu0 0.0
        %1153 = vmatpush1.xpose.msra.mxu0 0.0
        %1154 = vmatprep.subr.mxu0 0.0
        %1155 = vmatpush1.xpose.msra.mxu0 0.0
        %1156 = vmatprep.subr.mxu0 0.0
        %1157 = vmatpush1.xpose.msra.mxu0 0.0
        %1158 = vmatprep.subr.mxu0 0.0
        %1159 = vmatpush1.xpose.msra.mxu0 0.0
        %1160 = vmatprep.subr.mxu0 0.0
        %1161 = vmatpush1.xpose.msra.mxu0 0.0
        %1162 = vmatprep.subr.mxu0 0.0
        %1163 = vmatpush1.xpose.msra.mxu0 0.0
        %1164 = vmatprep.subr.mxu0 0.0
        %1165 = vmatpush1.xpose.msra.mxu0 0.0
        %1166 = vmatprep.subr.mxu0 0.0
        %1167 = vmatpush1.xpose.msra.mxu0 0.0
        %1168 = vmatprep.subr.mxu0 0.0
        %1169 = vmatpush1.xpose.msra.mxu0 0.0
        %1170 = vmatprep.subr.mxu0 0.0
        %1171 = vmatpush1.xpose.msra.mxu0 0.0
        %1172 = vmatprep.subr.mxu0 0.0
        %1173 = vmatpush1.xpose.msra.mxu0 0.0
        %1174 = vmatprep.subr.mxu0 0.0
        %1175 = vmatpush1.xpose.msra.mxu0 0.0
        %1176 = vmatprep.subr.mxu0 0.0
        %1177 = vmatpush1.xpose.msra.mxu0 0.0
        %1178 = vmatprep.subr.mxu0 0.0
        %1179 = vmatpush1.xpose.msra.mxu0 0.0
        %1180 = vmatprep.subr.mxu0 0.0
        %1181 = vmatpush1.xpose.msra.mxu0 0.0
        %1182 = vmatprep.subr.mxu0 0.0
        %1183 = vmatpush1.xpose.msra.mxu0 0.0
        %1184 = vmatprep.subr.mxu0 0.0
        %1185 = vmatpush1.xpose.msra.mxu0 0.0
        %1186 = vmatprep.subr.mxu0 0.0
        %1187 = vmatpush1.xpose.msra.mxu0 0.0
        %1188 = vmatprep.subr.mxu0 0.0
        %1189 = vmatpush1.xpose.msra.mxu0 0.0
        %1190 = vmatprep.mubr.f32.mxu0 0.0
        %1191 = vmatmul.mubr.f32.gmra.mrb[0].mxu0 %v1122
        %v1192 = vpop.f32.mrb[0].mxu0
        %v1193 = vadd.f32 0.0, %v1192
        %v1194 = vpop.f32.mrb[0].mxu0
        %1195 = vdwg.mxu0
        %1196 = vrot.lane.b32.xlu0 %v783, 112
        %v1197 = vpop.permute.xlu0 %1196
        %1198 = vrot.lane.b32.xlu0 %v783, 80
        %v1199 = vpop.permute.xlu0 %1198
        %v1200 = vsel %vm789, %v1197, 0
        %v1202 = vsel %vm789, %v1199, 0
        %1204 = vmatprep.subr.mxu0 0.0
        %1205 = vmatpush1.xpose.msra.mxu0 %v1202
        %1206 = vmatprep.subr.mxu0 0.0
        %1207 = vmatpush1.xpose.msra.mxu0 0.0
        %1208 = vmatprep.subr.mxu0 0.0
        %1209 = vmatpush1.xpose.msra.mxu0 0.0
        %1210 = vmatprep.subr.mxu0 0.0
        %1211 = vmatpush1.xpose.msra.mxu0 0.0
        %1212 = vmatprep.subr.mxu0 0.0
        %1213 = vmatpush1.xpose.msra.mxu0 0.0
        %1214 = vmatprep.subr.mxu0 0.0
        %1215 = vmatpush1.xpose.msra.mxu0 0.0
        %1216 = vmatprep.subr.mxu0 0.0
        %1217 = vmatpush1.xpose.msra.mxu0 0.0
        %1218 = vmatprep.subr.mxu0 0.0
        %1219 = vmatpush1.xpose.msra.mxu0 0.0
        %1220 = vmatprep.subr.mxu0 0.0
        %1221 = vmatpush1.xpose.msra.mxu0 0.0
        %1222 = vmatprep.subr.mxu0 0.0
        %1223 = vmatpush1.xpose.msra.mxu0 0.0
        %1224 = vmatprep.subr.mxu0 0.0
        %1225 = vmatpush1.xpose.msra.mxu0 0.0
        %1226 = vmatprep.subr.mxu0 0.0
        %1227 = vmatpush1.xpose.msra.mxu0 0.0
        %1228 = vmatprep.subr.mxu0 0.0
        %1229 = vmatpush1.xpose.msra.mxu0 0.0
        %1230 = vmatprep.subr.mxu0 0.0
        %1231 = vmatpush1.xpose.msra.mxu0 0.0
        %1232 = vmatprep.subr.mxu0 0.0
        %1233 = vmatpush1.xpose.msra.mxu0 0.0
        %1234 = vmatprep.subr.mxu0 0.0
        %1235 = vmatpush1.xpose.msra.mxu0 0.0
        %1236 = vmatprep.subr.mxu0 0.0
        %1237 = vmatpush1.xpose.msra.mxu0 0.0
        %1238 = vmatprep.subr.mxu0 0.0
        %1239 = vmatpush1.xpose.msra.mxu0 0.0
        %1240 = vmatprep.subr.mxu0 0.0
        %1241 = vmatpush1.xpose.msra.mxu0 0.0
        %1242 = vmatprep.subr.mxu0 0.0
        %1243 = vmatpush1.xpose.msra.mxu0 0.0
        %1244 = vmatprep.subr.mxu0 0.0
        %1245 = vmatpush1.xpose.msra.mxu0 0.0
        %1246 = vmatprep.subr.mxu0 0.0
        %1247 = vmatpush1.xpose.msra.mxu0 0.0
        %1248 = vmatprep.subr.mxu0 0.0
        %1249 = vmatpush1.xpose.msra.mxu0 0.0
        %1250 = vmatprep.subr.mxu0 0.0
        %1251 = vmatpush1.xpose.msra.mxu0 0.0
        %1252 = vmatprep.subr.mxu0 0.0
        %1253 = vmatpush1.xpose.msra.mxu0 0.0
        %1254 = vmatprep.subr.mxu0 0.0
        %1255 = vmatpush1.xpose.msra.mxu0 0.0
        %1256 = vmatprep.subr.mxu0 0.0
        %1257 = vmatpush1.xpose.msra.mxu0 0.0
        %1258 = vmatprep.subr.mxu0 0.0
        %1259 = vmatpush1.xpose.msra.mxu0 0.0
        %1260 = vmatprep.subr.mxu0 0.0
        %1261 = vmatpush1.xpose.msra.mxu0 0.0
        %1262 = vmatprep.subr.mxu0 0.0
        %1263 = vmatpush1.xpose.msra.mxu0 0.0
        %1264 = vmatprep.subr.mxu0 0.0
        %1265 = vmatpush1.xpose.msra.mxu0 0.0
        %1266 = vmatprep.subr.mxu0 0.0
        %1267 = vmatpush1.xpose.msra.mxu0 0.0
        %1268 = vmatprep.mubr.f32.mxu0 0.0
        %1269 = vmatmul.mubr.f32.gmra.mrb[0].mxu0 %v1200
        %v1270 = vpop.f32.mrb[0].mxu0
        %v1271 = vadd.f32 0.0, %v1270
        %v1272 = vpop.f32.mrb[0].mxu0
        %1273 = vdwg.mxu0
        %v1274 = vsel %vm941, %v1193, -inf
        %1275 = vmax.xlane.f32.xlu0 %v1274
        %v1276 = vpop.xlane.xlu0 %1275
        %v1277 = vsel %vm941, %v1271, -inf
        %1278 = vmax.xlane.f32.xlu0 %v1277
        %v1279 = vpop.xlane.xlu0 %1278
        %v1280 = vsub.f32 %v1193, %v1276
        %v1281 = vsub.f32 %v1271, %v1279
        %v1282 = vmul.f32 %v1280, 1.442695
        %v1283 = vpow.pop %v1282
        %v1284 = vmul.f32 %v1281, 1.442695
        %v1285 = vpow.pop %v1284
        %v1286 = vsel %vm941, %v1283, 0.0
        %1287 = vadd.xlane.f32.xlu0 %v1286
        %v1288 = vpop.xlane.xlu0 %1287
        %v1289 = vsel %vm941, %v1285, 0.0
        %1290 = vadd.xlane.f32.xlu0 %v1289
        %v1291 = vpop.xlane.xlu0 %1290
        %v1292 = vrcp.pop %v1288
        %v1293 = vmul.f32 %v1283, %v1292
        %v1294 = vrcp.pop %v1291
        %v1295 = vmul.f32 %v1285, %v1294
        %s1296 = scalar_lea.vmem %s634, 8 [#allocation7]
        %1297 = vst.msk [vmem:[%s1296] sm:$0xff] %vm941, %v1293
        %1298 = vst.msk [vmem:[%s1296 + $0x10] sm:$0xff] %vm941, %v1295
        %1299 = vrot.lane.b32.xlu0 %v778, 48
        %v1300 = vpop.permute.xlu0 %1299
        %v1303 = vsel %vm941, %v1293, 0
        %1305 = vmatprep.subr.mxu0 0.0
        %1306 = vmatpush1.msra.mxu0 %v1300
        %1307 = vmatprep.subr.mxu0 0.0
        %1308 = vmatpush1.msra.mxu0 0.0
        %1309 = vmatprep.subr.mxu0 0.0
        %1310 = vmatpush1.msra.mxu0 0.0
        %1311 = vmatprep.subr.mxu0 0.0
        %1312 = vmatpush1.msra.mxu0 0.0
        %1313 = vmatprep.subr.mxu0 0.0
        %1314 = vmatpush1.msra.mxu0 0.0
        %1315 = vmatprep.subr.mxu0 0.0
        %1316 = vmatpush1.msra.mxu0 0.0
        %1317 = vmatprep.subr.mxu0 0.0
        %1318 = vmatpush1.msra.mxu0 0.0
        %1319 = vmatprep.subr.mxu0 0.0
        %1320 = vmatpush1.msra.mxu0 0.0
        %1321 = vmatprep.subr.mxu0 0.0
        %1322 = vmatpush1.msra.mxu0 0.0
        %1323 = vmatprep.subr.mxu0 0.0
        %1324 = vmatpush1.msra.mxu0 0.0
        %1325 = vmatprep.subr.mxu0 0.0
        %1326 = vmatpush1.msra.mxu0 0.0
        %1327 = vmatprep.subr.mxu0 0.0
        %1328 = vmatpush1.msra.mxu0 0.0
        %1329 = vmatprep.subr.mxu0 0.0
        %1330 = vmatpush1.msra.mxu0 0.0
        %1331 = vmatprep.subr.mxu0 0.0
        %1332 = vmatpush1.msra.mxu0 0.0
        %1333 = vmatprep.subr.mxu0 0.0
        %1334 = vmatpush1.msra.mxu0 0.0
        %1335 = vmatprep.subr.mxu0 0.0
        %1336 = vmatpush1.msra.mxu0 0.0
        %1337 = vmatprep.subr.mxu0 0.0
        %1338 = vmatpush1.msra.mxu0 0.0
        %1339 = vmatprep.subr.mxu0 0.0
        %1340 = vmatpush1.msra.mxu0 0.0
        %1341 = vmatprep.subr.mxu0 0.0
        %1342 = vmatpush1.msra.mxu0 0.0
        %1343 = vmatprep.subr.mxu0 0.0
        %1344 = vmatpush1.msra.mxu0 0.0
        %1345 = vmatprep.subr.mxu0 0.0
        %1346 = vmatpush1.msra.mxu0 0.0
        %1347 = vmatprep.subr.mxu0 0.0
        %1348 = vmatpush1.msra.mxu0 0.0
        %1349 = vmatprep.subr.mxu0 0.0
        %1350 = vmatpush1.msra.mxu0 0.0
        %1351 = vmatprep.subr.mxu0 0.0
        %1352 = vmatpush1.msra.mxu0 0.0
        %1353 = vmatprep.subr.mxu0 0.0
        %1354 = vmatpush1.msra.mxu0 0.0
        %1355 = vmatprep.subr.mxu0 0.0
        %1356 = vmatpush1.msra.mxu0 0.0
        %1357 = vmatprep.subr.mxu0 0.0
        %1358 = vmatpush1.msra.mxu0 0.0
        %1359 = vmatprep.subr.mxu0 0.0
        %1360 = vmatpush1.msra.mxu0 0.0
        %1361 = vmatprep.subr.mxu0 0.0
        %1362 = vmatpush1.msra.mxu0 0.0
        %1363 = vmatprep.subr.mxu0 0.0
        %1364 = vmatpush1.msra.mxu0 0.0
        %1365 = vmatprep.subr.mxu0 0.0
        %1366 = vmatpush1.msra.mxu0 0.0
        %1367 = vmatprep.subr.mxu0 0.0
        %1368 = vmatpush1.msra.mxu0 0.0
        %1369 = vmatprep.mubr.f32.mxu0 0.0
        %1370 = vmatmul.mubr.f32.gmra.mrb[0].mxu0 %v1303
        %v1371 = vpop.f32.mrb[0].mxu0
        %v1372 = vadd.f32 0.0, %v1371
        %v1373 = vpop.f32.mrb[0].mxu0
        %1374 = vdwg.mxu0
        %1375 = vrot.lane.b32.xlu0 %v783, 48
        %v1376 = vpop.permute.xlu0 %1375
        %v1379 = vsel %vm941, %v1295, 0
        %1381 = vmatprep.subr.mxu0 0.0
        %1382 = vmatpush1.msra.mxu0 %v1376
        %1383 = vmatprep.subr.mxu0 0.0
        %1384 = vmatpush1.msra.mxu0 0.0
        %1385 = vmatprep.subr.mxu0 0.0
        %1386 = vmatpush1.msra.mxu0 0.0
        %1387 = vmatprep.subr.mxu0 0.0
        %1388 = vmatpush1.msra.mxu0 0.0
        %1389 = vmatprep.subr.mxu0 0.0
        %1390 = vmatpush1.msra.mxu0 0.0
        %1391 = vmatprep.subr.mxu0 0.0
        %1392 = vmatpush1.msra.mxu0 0.0
        %1393 = vmatprep.subr.mxu0 0.0
        %1394 = vmatpush1.msra.mxu0 0.0
        %1395 = vmatprep.subr.mxu0 0.0
        %1396 = vmatpush1.msra.mxu0 0.0
        %1397 = vmatprep.subr.mxu0 0.0
        %1398 = vmatpush1.msra.mxu0 0.0
        %1399 = vmatprep.subr.mxu0 0.0
        %1400 = vmatpush1.msra.mxu0 0.0
        %1401 = vmatprep.subr.mxu0 0.0
        %1402 = vmatpush1.msra.mxu0 0.0
        %1403 = vmatprep.subr.mxu0 0.0
        %1404 = vmatpush1.msra.mxu0 0.0
        %1405 = vmatprep.subr.mxu0 0.0
        %1406 = vmatpush1.msra.mxu0 0.0
        %1407 = vmatprep.subr.mxu0 0.0
        %1408 = vmatpush1.msra.mxu0 0.0
        %1409 = vmatprep.subr.mxu0 0.0
        %1410 = vmatpush1.msra.mxu0 0.0
        %1411 = vmatprep.subr.mxu0 0.0
        %1412 = vmatpush1.msra.mxu0 0.0
        %1413 = vmatprep.subr.mxu0 0.0
        %1414 = vmatpush1.msra.mxu0 0.0
        %1415 = vmatprep.subr.mxu0 0.0
        %1416 = vmatpush1.msra.mxu0 0.0
        %1417 = vmatprep.subr.mxu0 0.0
        %1418 = vmatpush1.msra.mxu0 0.0
        %1419 = vmatprep.subr.mxu0 0.0
        %1420 = vmatpush1.msra.mxu0 0.0
        %1421 = vmatprep.subr.mxu0 0.0
        %1422 = vmatpush1.msra.mxu0 0.0
        %1423 = vmatprep.subr.mxu0 0.0
        %1424 = vmatpush1.msra.mxu0 0.0
        %1425 = vmatprep.subr.mxu0 0.0
        %1426 = vmatpush1.msra.mxu0 0.0
        %1427 = vmatprep.subr.mxu0 0.0
        %1428 = vmatpush1.msra.mxu0 0.0
        %1429 = vmatprep.subr.mxu0 0.0
        %1430 = vmatpush1.msra.mxu0 0.0
        %1431 = vmatprep.subr.mxu0 0.0
        %1432 = vmatpush1.msra.mxu0 0.0
        %1433 = vmatprep.subr.mxu0 0.0
        %1434 = vmatpush1.msra.mxu0 0.0
        %1435 = vmatprep.subr.mxu0 0.0
        %1436 = vmatpush1.msra.mxu0 0.0
        %1437 = vmatprep.subr.mxu0 0.0
        %1438 = vmatpush1.msra.mxu0 0.0
        %1439 = vmatprep.subr.mxu0 0.0
        %1440 = vmatpush1.msra.mxu0 0.0
        %1441 = vmatprep.subr.mxu0 0.0
        %1442 = vmatpush1.msra.mxu0 0.0
        %1443 = vmatprep.subr.mxu0 0.0
        %1444 = vmatpush1.msra.mxu0 0.0
        %1445 = vmatprep.mubr.f32.mxu0 0.0
        %1446 = vmatmul.mubr.f32.gmra.mrb[0].mxu0 %v1379
        %v1447 = vpop.f32.mrb[0].mxu0
        %v1448 = vadd.f32 0.0, %v1447
        %v1449 = vpop.f32.mrb[0].mxu0
        %1450 = vdwg.mxu0
        %1453 = vrot.lane.b32.xlu0 %v1372, 16
        %v1454 = vpop.permute.xlu0 %1453
        %1455 = vrot.lane.b32.xlu0 %v1448, 16
        %v1456 = vpop.permute.xlu0 %1455
        %v1459 = vsel %vm789, %v1039, %v1454
        %v1460 = vsel %vm789, %v1115, %v1456
        %v1461 = vld [vmem:[%s648] sm:$0xff]
        %v1462 = vld [vmem:[%s648 + $0x8] sm:$0xff]
        %v1463 = vld [vmem:[%s648 + $0x10] sm:$0xff]
        %v1464 = vld [vmem:[%s648 + $0x18] sm:$0xff]
        %v1465 = vld [vmem:[%s651] sm:$0x1]
        %v1467 = vlaneseq
        %v1468 = vshrl.u32 %v1467, 7
        %v1469 = vsub.s32 0, %v1468
        %v1470 = vrot.slane %v1465, %v1469
        %v1473 = vsel %vm704, %v1459, 0
        %v1476 = vsel %vm704, %v1460, 0
        %1478 = vmatprep.subr.mxu0 0.0
        %1479 = vmatpush1.msra.mxu0 %v1461
        %1480 = vmatprep.subr.mxu0 0.0
        %1481 = vmatpush1.msra.mxu0 %v1462
        %1482 = vmatprep.subr.mxu0 0.0
        %1483 = vmatpush1.msra.mxu0 %v1463
        %1484 = vmatprep.subr.mxu0 0.0
        %1485 = vmatpush1.msra.mxu0 %v1464
        %1486 = vmatprep.subr.mxu0 0.0
        %1487 = vmatpush1.msra.mxu0 0.0
        %1488 = vmatprep.subr.mxu0 0.0
        %1489 = vmatpush1.msra.mxu0 0.0
        %1490 = vmatprep.subr.mxu0 0.0
        %1491 = vmatpush1.msra.mxu0 0.0
        %1492 = vmatprep.subr.mxu0 0.0
        %1493 = vmatpush1.msra.mxu0 0.0
        %1494 = vmatprep.subr.mxu0 0.0
        %1495 = vmatpush1.msra.mxu0 0.0
        %1496 = vmatprep.subr.mxu0 0.0
        %1497 = vmatpush1.msra.mxu0 0.0
        %1498 = vmatprep.subr.mxu0 0.0
        %1499 = vmatpush1.msra.mxu0 0.0
        %1500 = vmatprep.subr.mxu0 0.0
        %1501 = vmatpush1.msra.mxu0 0.0
        %1502 = vmatprep.subr.mxu0 0.0
        %1503 = vmatpush1.msra.mxu0 0.0
        %1504 = vmatprep.subr.mxu0 0.0
        %1505 = vmatpush1.msra.mxu0 0.0
        %1506 = vmatprep.subr.mxu0 0.0
        %1507 = vmatpush1.msra.mxu0 0.0
        %1508 = vmatprep.subr.mxu0 0.0
        %1509 = vmatpush1.msra.mxu0 0.0
        %1510 = vmatprep.subr.mxu0 0.0
        %1511 = vmatpush1.msra.mxu0 0.0
        %1512 = vmatprep.subr.mxu0 0.0
        %1513 = vmatpush1.msra.mxu0 0.0
        %1514 = vmatprep.subr.mxu0 0.0
        %1515 = vmatpush1.msra.mxu0 0.0
        %1516 = vmatprep.subr.mxu0 0.0
        %1517 = vmatpush1.msra.mxu0 0.0
        %1518 = vmatprep.subr.mxu0 0.0
        %1519 = vmatpush1.msra.mxu0 0.0
        %1520 = vmatprep.subr.mxu0 0.0
        %1521 = vmatpush1.msra.mxu0 0.0
        %1522 = vmatprep.subr.mxu0 0.0
        %1523 = vmatpush1.msra.mxu0 0.0
        %1524 = vmatprep.subr.mxu0 0.0
        %1525 = vmatpush1.msra.mxu0 0.0
        %1526 = vmatprep.subr.mxu0 0.0
        %1527 = vmatpush1.msra.mxu0 0.0
        %1528 = vmatprep.subr.mxu0 0.0
        %1529 = vmatpush1.msra.mxu0 0.0
        %1530 = vmatprep.subr.mxu0 0.0
        %1531 = vmatpush1.msra.mxu0 0.0
        %1532 = vmatprep.subr.mxu0 0.0
        %1533 = vmatpush1.msra.mxu0 0.0
        %1534 = vmatprep.subr.mxu0 0.0
        %1535 = vmatpush1.msra.mxu0 0.0
        %1536 = vmatprep.subr.mxu0 0.0
        %1537 = vmatpush1.msra.mxu0 0.0
        %1538 = vmatprep.subr.mxu0 0.0
        %1539 = vmatpush1.msra.mxu0 0.0
        %1540 = vmatprep.subr.mxu0 0.0
        %1541 = vmatpush1.msra.mxu0 0.0
        %1542 = vmatprep.mubr.f32.mxu0 0.0
        %1543 = vmatmul.mubr.f32.gmra.mrb[0].mxu0 %v1473
        %v1544 = vpop.f32.mrb[0].mxu0
        %v1545 = vadd.f32 %v1470, %v1544
        %v1546 = vpop.f32.mrb[0].mxu0
        %1547 = vmatprep.mubr.f32.mxu0 0.0
        %1548 = vmatmul.mubr.f32.gmra.mrb[0].mxu0 %v1476
        %v1549 = vpop.f32.mrb[0].mxu0
        %v1550 = vadd.f32 %v1470, %v1549
        %v1551 = vpop.f32.mrb[0].mxu0
        %1552 = vdwg.mxu0
        %v1553 = vadd.f32 %v1545, %v691
        %v1554 = vadd.f32 %v1550, %v692
        %v1555 = vsel %vm704, %v1553, 0.0
        %1556 = vadd.xlane.f32.xlu0 %v1555
        %v1557 = vpop.xlane.xlu0 %1556
        %v1558 = vsel %vm704, %v1554, 0.0
        %1559 = vadd.xlane.f32.xlu0 %v1558
        %v1560 = vpop.xlane.xlu0 %1559
        %v1561 = vrcp.pop 32.0
        %v1562 = vmul.f32 %v1557, %v1561
        %v1563 = vmul.f32 %v1560, %v1561
        %v1564 = vsub.f32 %v1553, %v1562
        %v1565 = vsub.f32 %v1554, %v1563
        %v1566 = vmul.f32 %v1564, %v1564
        %v1567 = vmul.f32 %v1565, %v1565
        %v1568 = vsel %vm704, %v1566, 0.0
        %1569 = vadd.xlane.f32.xlu0 %v1568
        %v1570 = vpop.xlane.xlu0 %1569
        %v1571 = vsel %vm704, %v1567, 0.0
        %1572 = vadd.xlane.f32.xlu0 %v1571
        %v1573 = vpop.xlane.xlu0 %1572
        %v1574 = vmul.f32 %v1570, %v1561
        %v1575 = vmul.f32 %v1573, %v1561
        %v1576 = vadd.f32 %v1574, 1e-05
        %v1577 = vadd.f32 %v1575, 1e-05
        %v1578 = vrsqrt.pop %v1576
        %v1579 = vrsqrt.pop %v1577
        %v1580 = vmul.f32 %v1564, %v1578
        %v1581 = vmul.f32 %v1565, %v1579
        %v1582 = vld [vmem:[%s654] sm:$0x1]
        %v1584 = vlaneseq
        %v1585 = vshrl.u32 %v1584, 7
        %v1586 = vsub.s32 0, %v1585
        %v1587 = vrot.slane %v1582, %v1586
        %v1589 = vmul.f32 %v1580, %v1587
        %v1590 = vmul.f32 %v1581, %v1587
        %v1591 = vld [vmem:[%s657] sm:$0x1]
        %v1593 = vlaneseq
        %v1594 = vshrl.u32 %v1593, 7
        %v1595 = vsub.s32 0, %v1594
        %v1596 = vrot.slane %v1591, %v1595
        %v1598 = vadd.f32 %v1589, %v1596
        %v1599 = vadd.f32 %v1590, %v1596
        %v1600 = vld [vmem:[%s662] sm:$0xff]
        %v1601 = vld [vmem:[%s662 + $0x8] sm:$0xff]
        %v1602 = vld [vmem:[%s662 + $0x10] sm:$0xff]
        %v1603 = vld [vmem:[%s662 + $0x18] sm:$0xff]
        %v1604 = vld [vmem:[%s665] sm:$0x1]
        %v1606 = vlaneseq
        %v1607 = vshrl.u32 %v1606, 7
        %v1608 = vsub.s32 0, %v1607
        %v1609 = vrot.slane %v1604, %v1608
        %v1612 = vsel %vm704, %v1598, 0
        %v1615 = vsel %vm704, %v1599, 0
        %1617 = vmatprep.subr.mxu0 0.0
        %1618 = vmatpush1.msra.mxu0 %v1600
        %1619 = vmatprep.subr.mxu0 0.0
        %1620 = vmatpush1.msra.mxu0 %v1601
        %1621 = vmatprep.subr.mxu0 0.0
        %1622 = vmatpush1.msra.mxu0 %v1602
        %1623 = vmatprep.subr.mxu0 0.0
        %1624 = vmatpush1.msra.mxu0 %v1603
        %1625 = vmatprep.subr.mxu0 0.0
        %1626 = vmatpush1.msra.mxu0 0.0
        %1627 = vmatprep.subr.mxu0 0.0
        %1628 = vmatpush1.msra.mxu0 0.0
        %1629 = vmatprep.subr.mxu0 0.0
        %1630 = vmatpush1.msra.mxu0 0.0
        %1631 = vmatprep.subr.mxu0 0.0
        %1632 = vmatpush1.msra.mxu0 0.0
        %1633 = vmatprep.subr.mxu0 0.0
        %1634 = vmatpush1.msra.mxu0 0.0
        %1635 = vmatprep.subr.mxu0 0.0
        %1636 = vmatpush1.msra.mxu0 0.0
        %1637 = vmatprep.subr.mxu0 0.0
        %1638 = vmatpush1.msra.mxu0 0.0
        %1639 = vmatprep.subr.mxu0 0.0
        %1640 = vmatpush1.msra.mxu0 0.0
        %1641 = vmatprep.subr.mxu0 0.0
        %1642 = vmatpush1.msra.mxu0 0.0
        %1643 = vmatprep.subr.mxu0 0.0
        %1644 = vmatpush1.msra.mxu0 0.0
        %1645 = vmatprep.subr.mxu0 0.0
        %1646 = vmatpush1.msra.mxu0 0.0
        %1647 = vmatprep.subr.mxu0 0.0
        %1648 = vmatpush1.msra.mxu0 0.0
        %1649 = vmatprep.subr.mxu0 0.0
        %1650 = vmatpush1.msra.mxu0 0.0
        %1651 = vmatprep.subr.mxu0 0.0
        %1652 = vmatpush1.msra.mxu0 0.0
        %1653 = vmatprep.subr.mxu0 0.0
        %1654 = vmatpush1.msra.mxu0 0.0
        %1655 = vmatprep.subr.mxu0 0.0
        %1656 = vmatpush1.msra.mxu0 0.0
        %1657 = vmatprep.subr.mxu0 0.0
        %1658 = vmatpush1.msra.mxu0 0.0
        %1659 = vmatprep.subr.mxu0 0.0
        %1660 = vmatpush1.msra.mxu0 0.0
        %1661 = vmatprep.subr.mxu0 0.0
        %1662 = vmatpush1.msra.mxu0 0.0
        %1663 = vmatprep.subr.mxu0 0.0
        %1664 = vmatpush1.msra.mxu0 0.0
        %1665 = vmatprep.subr.mxu0 0.0
        %1666 = vmatpush1.msra.mxu0 0.0
        %1667 = vmatprep.subr.mxu0 0.0
        %1668 = vmatpush1.msra.mxu0 0.0
        %1669 = vmatprep.subr.mxu0 0.0
        %1670 = vmatpush1.msra.mxu0 0.0
        %1671 = vmatprep.subr.mxu0 0.0
        %1672 = vmatpush1.msra.mxu0 0.0
        %1673 = vmatprep.subr.mxu0 0.0
        %1674 = vmatpush1.msra.mxu0 0.0
        %1675 = vmatprep.subr.mxu0 0.0
        %1676 = vmatpush1.msra.mxu0 0.0
        %1677 = vmatprep.subr.mxu0 0.0
        %1678 = vmatpush1.msra.mxu0 0.0
        %1679 = vmatprep.subr.mxu0 0.0
        %1680 = vmatpush1.msra.mxu0 0.0
        %1681 = vmatprep.mubr.f32.mxu0 0.0
        %1682 = vmatmul.mubr.f32.gmra.mrb[0].mxu0 %v1612
        %v1683 = vpop.f32.mrb[0].mxu0
        %v1684 = vadd.f32 %v1609, %v1683
        %v1685 = vpop.f32.mrb[0].mxu0
        %1686 = vmatprep.mubr.f32.mxu0 0.0
        %1687 = vmatmul.mubr.f32.gmra.mrb[0].mxu0 %v1615
        %v1688 = vpop.f32.mrb[0].mxu0
        %v1689 = vadd.f32 %v1609, %v1688
        %v1690 = vpop.f32.mrb[0].mxu0
        %1691 = vdwg.mxu0
        %v1692 = vmax.f32 %v1684, 0.0
        %v1693 = vmax.f32 %v1689, 0.0
        %v1694 = vld [vmem:[%s670] sm:$0xff]
        %v1695 = vld [vmem:[%s670 + $0x8] sm:$0xff]
        %v1696 = vld [vmem:[%s670 + $0x10] sm:$0xff]
        %v1697 = vld [vmem:[%s670 + $0x18] sm:$0xff]
        %v1698 = vld [vmem:[%s670 + $0x20] sm:$0xff]
        %v1699 = vld [vmem:[%s670 + $0x28] sm:$0xff]
        %v1700 = vld [vmem:[%s670 + $0x30] sm:$0xff]
        %v1701 = vld [vmem:[%s670 + $0x38] sm:$0xff]
        %v1702 = vld [vmem:[%s673] sm:$0x1]
        %v1704 = vlaneseq
        %v1705 = vshrl.u32 %v1704, 7
        %v1706 = vsub.s32 0, %v1705
        %v1707 = vrot.slane %v1702, %v1706
        %vm1709 = vcmask 523264
        %v1711 = vsel %vm1709, %v1692, 0
        %v1714 = vsel %vm1709, %v1693, 0
        %1716 = vmatprep.subr.mxu0 0.0
        %1717 = vmatpush1.msra.mxu0 %v1694
        %1718 = vmatprep.subr.mxu0 0.0
        %1719 = vmatpush1.msra.mxu0 %v1695
        %1720 = vmatprep.subr.mxu0 0.0
        %1721 = vmatpush1.msra.mxu0 %v1696
        %1722 = vmatprep.subr.mxu0 0.0
        %1723 = vmatpush1.msra.mxu0 %v1697
        %1724 = vmatprep.subr.mxu0 0.0
        %1725 = vmatpush1.msra.mxu0 %v1698
        %1726 = vmatprep.subr.mxu0 0.0
        %1727 = vmatpush1.msra.mxu0 %v1699
        %1728 = vmatprep.subr.mxu0 0.0
        %1729 = vmatpush1.msra.mxu0 %v1700
        %1730 = vmatprep.subr.mxu0 0.0
        %1731 = vmatpush1.msra.mxu0 %v1701
        %1732 = vmatprep.subr.mxu0 0.0
        %1733 = vmatpush1.msra.mxu0 0.0
        %1734 = vmatprep.subr.mxu0 0.0
        %1735 = vmatpush1.msra.mxu0 0.0
        %1736 = vmatprep.subr.mxu0 0.0
        %1737 = vmatpush1.msra.mxu0 0.0
        %1738 = vmatprep.subr.mxu0 0.0
        %1739 = vmatpush1.msra.mxu0 0.0
        %1740 = vmatprep.subr.mxu0 0.0
        %1741 = vmatpush1.msra.mxu0 0.0
        %1742 = vmatprep.subr.mxu0 0.0
        %1743 = vmatpush1.msra.mxu0 0.0
        %1744 = vmatprep.subr.mxu0 0.0
        %1745 = vmatpush1.msra.mxu0 0.0
        %1746 = vmatprep.subr.mxu0 0.0
        %1747 = vmatpush1.msra.mxu0 0.0
        %1748 = vmatprep.subr.mxu0 0.0
        %1749 = vmatpush1.msra.mxu0 0.0
        %1750 = vmatprep.subr.mxu0 0.0
        %1751 = vmatpush1.msra.mxu0 0.0
        %1752 = vmatprep.subr.mxu0 0.0
        %1753 = vmatpush1.msra.mxu0 0.0
        %1754 = vmatprep.subr.mxu0 0.0
        %1755 = vmatpush1.msra.mxu0 0.0
        %1756 = vmatprep.subr.mxu0 0.0
        %1757 = vmatpush1.msra.mxu0 0.0
        %1758 = vmatprep.subr.mxu0 0.0
        %1759 = vmatpush1.msra.mxu0 0.0
        %1760 = vmatprep.subr.mxu0 0.0
        %1761 = vmatpush1.msra.mxu0 0.0
        %1762 = vmatprep.subr.mxu0 0.0
        %1763 = vmatpush1.msra.mxu0 0.0
        %1764 = vmatprep.subr.mxu0 0.0
        %1765 = vmatpush1.msra.mxu0 0.0
        %1766 = vmatprep.subr.mxu0 0.0
        %1767 = vmatpush1.msra.mxu0 0.0
        %1768 = vmatprep.subr.mxu0 0.0
        %1769 = vmatpush1.msra.mxu0 0.0
        %1770 = vmatprep.subr.mxu0 0.0
        %1771 = vmatpush1.msra.mxu0 0.0
        %1772 = vmatprep.subr.mxu0 0.0
        %1773 = vmatpush1.msra.mxu0 0.0
        %1774 = vmatprep.subr.mxu0 0.0
        %1775 = vmatpush1.msra.mxu0 0.0
        %1776 = vmatprep.subr.mxu0 0.0
        %1777 = vmatpush1.msra.mxu0 0.0
        %1778 = vmatprep.subr.mxu0 0.0
        %1779 = vmatpush1.msra.mxu0 0.0
        %1780 = vmatprep.mubr.f32.mxu0 0.0
        %1781 = vmatmul.mubr.f32.gmra.mrb[0].mxu0 %v1711
        %v1782 = vpop.f32.mrb[0].mxu0
        %v1783 = vadd.f32 %v1707, %v1782
        %v1784 = vpop.f32.mrb[0].mxu0
        %1785 = vmatprep.mubr.f32.mxu0 0.0
        %1786 = vmatmul.mubr.f32.gmra.mrb[0].mxu0 %v1714
        %v1787 = vpop.f32.mrb[0].mxu0
        %v1788 = vadd.f32 %v1707, %v1787
        %v1789 = vpop.f32.mrb[0].mxu0
        %1790 = vdwg.mxu0
        %v1791 = vadd.f32 %v1783, %v1598
        %v1792 = vadd.f32 %v1788, %v1599
        %v1793 = vsel %vm704, %v1791, 0.0
        %1794 = vadd.xlane.f32.xlu0 %v1793
        %v1795 = vpop.xlane.xlu0 %1794
        %v1796 = vsel %vm704, %v1792, 0.0
        %1797 = vadd.xlane.f32.xlu0 %v1796
        %v1798 = vpop.xlane.xlu0 %1797
        %v1799 = vmul.f32 %v1795, %v1561
        %v1800 = vmul.f32 %v1798, %v1561
        %v1801 = vsub.f32 %v1791, %v1799
        %v1802 = vsub.f32 %v1792, %v1800
        %v1803 = vmul.f32 %v1801, %v1801
        %v1804 = vmul.f32 %v1802, %v1802
        %v1805 = vsel %vm704, %v1803, 0.0
        %1806 = vadd.xlane.f32.xlu0 %v1805
        %v1807 = vpop.xlane.xlu0 %1806
        %v1808 = vsel %vm704, %v1804, 0.0
        %1809 = vadd.xlane.f32.xlu0 %v1808
        %v1810 = vpop.xlane.xlu0 %1809
        %v1811 = vmul.f32 %v1807, %v1561
        %v1812 = vmul.f32 %v1810, %v1561
        %v1813 = vadd.f32 %v1811, 1e-05
        %v1814 = vadd.f32 %v1812, 1e-05
        %v1815 = vrsqrt.pop %v1813
        %v1816 = vrsqrt.pop %v1814
        %v1817 = vmul.f32 %v1801, %v1815
        %v1818 = vmul.f32 %v1802, %v1816
        %v1819 = vld [vmem:[%s676] sm:$0x1]
        %v1821 = vlaneseq
        %v1822 = vshrl.u32 %v1821, 7
        %v1823 = vsub.s32 0, %v1822
        %v1824 = vrot.slane %v1819, %v1823
        %v1826 = vmul.f32 %v1817, %v1824
        %v1827 = vmul.f32 %v1818, %v1824
        %v1828 = vld [vmem:[%s679] sm:$0x1]
        %v1830 = vlaneseq
        %v1831 = vshrl.u32 %v1830, 7
        %v1832 = vsub.s32 0, %v1831
        %v1833 = vrot.slane %v1828, %v1832
        %v1835 = vadd.f32 %v1826, %v1833
        %v1836 = vadd.f32 %v1827, %v1833
        %1837 = vst.msk [vmem:[#allocation2] sm:$0xff] %vm704, %v1835
        %1838 = vst.msk [vmem:[#allocation2 + $0x8] sm:$0xff] %vm704, %v1836
        %p1839 = scmp.eq.s32.totalorder %s36, 3
        // Predicated region
        $region81: #{tpu_custom_call.1} parent=71 // pred_check
          %p1840 = pneg %p1839
        $region82: #{tpu_custom_call.1} parent=71 // pred_check_branch
          %1842 = sbr.rel (%p1840) target = $region84
        $region83: #{tpu_custom_call.1} parent=71 // pred_region
          %1843 = vst.msk [vmem:[#allocation6] sm:$0xff] %vm704, %v1835
          %1844 = vst.msk [vmem:[#allocation6 + $0x8] sm:$0xff] %vm704, %v1836
        $region84: #{tpu_custom_call.1} parent=71 // pred_fallthru
          _
        %s1845 = sand.u32 %s417, 1
        %s1846 = scalar_lea.sflag [#allocation8], %s1845
        %s1847 = sand.u32 %s417, 1
        %s1848 = smul.addr %s1847, 32
        %s1849 = scalar_lea.vmem [#allocation7], %s1848
        // Predicated region
        $region85: #{tpu_custom_call.1} parent=71 // pred_check
          %p1850 = pneg %p399
        $region86: #{tpu_custom_call.1} parent=71 // pred_check_branch
          %1852 = sbr.rel (%p1850) target = $region88
        $region87: #{tpu_custom_call.1} parent=71 // pred_region
          %s1853 = smul.u32 2, %s35
          %s1855 = ssub.s32 256, 256
          %1856 = vsyncadd [#allocation5], %s1855
          %s1857 = smul.addr %s1853, 128
          %s1858 = scalar_lea.hbm %s13, %s1857
          %s1859 = sshll.u32 [#allocation6], 4
          %s1860 = int_to_ptr.vmem [resolvable:$true] %s1859
          %1865 = dma.vmem_to_hbm [thread:$0]  %s1860, 256, %s1858, [#allocation5], 128, 128, 8
        $region88: #{tpu_custom_call.1} parent=71 // pred_fallthru
          _
        // Predicated region
        $region89: #{tpu_custom_call.1} parent=71 // pred_check
          %p1866 = pneg %p427
        $region90: #{tpu_custom_call.1} parent=71 // pred_check_branch
          %1868 = sbr.rel (%p1866) target = $region92
        $region91: #{tpu_custom_call.1} parent=71 // pred_region
          #allocation10 [shape = 'u32[6]{0}', space=smem, size = 0x18, scoped, tag = 'DMA stride descriptor']
          %s1869 = smul.u32 2, %s35
          %s1871 = ssub.s32 512, 512
          %1872 = vsyncadd %s1846, %s1871
          %s1873 = smul.addr %s36, 2
          %s1874 = smul.addr %s1869, 8
          %s1875 = sadd.s32 %s1873, %s1874
          %s1876 = smul.addr %s1875, 128
          %s1877 = scalar_lea.hbm %s14, %s1876
          %s1879 = sshll.u32 1, 14
          %s1880 = sxor.u32 4294967295, %s1879
          %s1883 = sshll.u32 7, 18
          %s1884 = sxor.u32 4294967295, %s1883
          %s1885 = sand.u32 0, %s1884
          %s1887 = sor.u32 %s1885, 0
          %s1889 = sshll.u32 3, 24
          %s1890 = sxor.u32 4294967295, %s1889
          %s1891 = sand.u32 %s1887, %s1890
          %s1893 = sor.u32 %s1891, 0
          %s1894 = sshll.u32 %s1849, 4
          %s1895 = int_to_ptr.vmem [resolvable:$true] %s1894
          %1901 = sst [smem:[#allocation10]] 256
          %s1902 = scalar_lea.smem [#allocation10], 1
          %1903 = sst [smem:[%s1902]] 1024
          %s1904 = scalar_lea.smem [#allocation10], 2
          %1905 = sst [smem:[%s1904]] 2
          %s1906 = scalar_lea.smem [#allocation10], 3
          %1907 = sst [smem:[%s1906]] 128
          %s1908 = scalar_lea.smem [#allocation10], 4
          %1909 = sst [smem:[%s1908]] 128
          %s1910 = scalar_lea.smem [#allocation10], 5
          %1911 = sst [smem:[%s1910]] 8
          %1913 = dma.general %s1895, 512, %s1877, %s1846, [#allocation9], [#allocation10], %s1893, 0
        $region92: #{tpu_custom_call.1} parent=71 // pred_fallthru
          _
        // Predicated region
        $region93: #{tpu_custom_call.1} parent=71 // pred_check
          %p1914 = pneg %p399
        $region94: #{tpu_custom_call.1} parent=71 // pred_check_branch
          %1916 = sbr.rel (%p1914) target = $region96
        $region95: #{tpu_custom_call.1} parent=71 // pred_region
          %1917 = dma.done [#allocation5], 256
        $region96: #{tpu_custom_call.1} parent=71 // pred_fallthru
          _
      $region72: #{tpu_custom_call.1} parent=5 // pred_fallthru
        _
      %p1918 = scmp.le.s32.totalorder 2, %s26
      // Predicated region
      $region97: #{tpu_custom_call.1} parent=5 // pred_check
        %p1919 = pneg %p1918
      $region98: #{tpu_custom_call.1} parent=5 // pred_check_branch
        %1921 = sbr.rel (%p1919) target = $region100
      $region99: #{tpu_custom_call.1} parent=5 // pred_region
        %s1922 = ssub.s32 %s26, 2
        // Predicated region
        $region101: #{tpu_custom_call.1} parent=99 // pred_check
          %p1923 = pneg %p433
        $region102: #{tpu_custom_call.1} parent=99 // pred_check_branch
          %1925 = sbr.rel (%p1923) target = $region104
        $region103: #{tpu_custom_call.1} parent=99 // pred_region
          %s1926 = sand.u32 %s418, 1
          %s1927 = scalar_lea.sflag [#allocation8], %s1926
          %s1928 = sand.u32 %s418, 1
          %s1929 = smul.addr %s1928, 32
          %s1930 = scalar_lea.vmem [#allocation7], %s1929
          %1931 = dma.done %s1927, 512
        $region104: #{tpu_custom_call.1} parent=99 // pred_fallthru
          _
      $region100: #{tpu_custom_call.1} parent=5 // pred_fallthru
        _
    $region6: #{tpu_custom_call.1} parent=1 // loop_footer
      %s30 = sadd.s32 1, %s26
    $region7: #{tpu_custom_call.1} parent=1 // loop_footer_branch
      %25 = sbr.rel target = $region3
    $region8: #{tpu_custom_call.1} parent=1 // loop_exit
      _
    %1932 = vsyncpa [#allocation4], 1
    %s1933 = scalar_lea.sflag [#allocation4], 1
    %1934 = vsyncpa %s1933, 1
    %1935 = vsyncpa [#allocation5], 1
    %s1936 = scalar_lea.sflag [#allocation5], 1
    %1937 = vsyncpa %s1936, 1
    %1938 = vsyncpa [#allocation8], 1
    %s1939 = scalar_lea.sflag [#allocation8], 1
    %1940 = vsyncpa %s1939, 1

</llo_original>
